<compile_context>
chip_gen: v7x
topology: tpu7x:2x2x1
jax: 0.10.0
libtpu: 0.0.40
codegen_flags: <defaults>
</compile_context>

<pallas_src>
import numpy as np
import jax
import jax.numpy as jnp
from jax.experimental import pallas as pl
from jax.experimental.pallas import tpu as pltpu


def _cnn_kernel(x_ref, w1_ref, b1_ref, w2_ref, b2_ref, w3_ref, b3_ref,
                wfc_ref, bfc_ref, out_ref):
    x = x_ref[...]                                                    # (Cin*L, BB)

    # Conv1d(k=1) + ReLU  (block-diagonal weight)
    h1 = jnp.dot(w1_ref[...], x, preferred_element_type=jnp.float32)
    h1 = jnp.maximum(h1 + b1_ref[...], 0.0)                           # (C1*L, BB)

    # Conv1d(k=3, valid) + ReLU (banded weight, rows = [even positions | odd positions])
    h2 = jnp.dot(w2_ref[...], h1, preferred_element_type=jnp.float32)
    h2 = jnp.maximum(h2 + b2_ref[...], 0.0)                           # (2*C2*P1, BB)

    # MaxPool1d(2): even/odd position blocks are contiguous sublane halves.
    half2 = w2_ref.shape[0] // 2
    p1 = jnp.maximum(h2[:half2], h2[half2:])                          # (C2*P1, BB)

    # Conv1d(k=3, valid) + ReLU
    h3 = jnp.dot(w3_ref[...], p1, preferred_element_type=jnp.float32)
    h3 = jnp.maximum(h3 + b3_ref[...], 0.0)                           # (2*C3*P2, BB)

    half3 = w3_ref.shape[0] // 2
    p2 = jnp.maximum(h3[:half3], h3[half3:])                          # (C3*P2, BB)

    # Linear(C3*P2 -> 1): p2 row order == PyTorch flatten order, wfc used as-is.
    out = jnp.dot(wfc_ref[...], p2, preferred_element_type=jnp.float32)  # (1, BB)
    out_ref[...] = out + bfc_ref[0, 0]
    # TODO(synk): nn.Dropout(droprate=0) is identity at inference; omitted.


def cnn_forward(x, kparams, *, block_b=256):
    w1, b1, w2, b2, w3, b3, wfc, bfc = kparams
    B, L, Cin = x.shape
    F0 = Cin * L
    M1, M2, M3 = w1.shape[0], w2.shape[0], w3.shape[0]

    # (B, L, Cin) -> (Cin*L, B): features on sublanes, batch on lanes (layout plumbing only).
    xt = jnp.transpose(x, (2, 1, 0)).reshape(F0, B)
    n_blocks = pl.cdiv(B, block_b)
    B_pad = n_blocks * block_b
    if B_pad != B:
        xt = jnp.pad(xt, ((0, 0), (0, B_pad - B)))

    out = pl.pallas_call(
        _cnn_kernel,
        out_shape=jax.ShapeDtypeStruct((1, B_pad), jnp.float32),
        grid_spec=pltpu.PrefetchScalarGridSpec(
            num_scalar_prefetch=0,
            grid=(n_blocks,),
            in_specs=[
                pl.BlockSpec((F0, block_b), lambda b: (0, b)),       # x block (64, BB)
                pl.BlockSpec((M1, F0), lambda b: (0, 0)),            # W1big (256, 64)
                pl.BlockSpec((M1, 1), lambda b: (0, 0)),             # b1
                pl.BlockSpec((M2, M1), lambda b: (0, 0)),            # W2big (448, 256)
                pl.BlockSpec((M2, 1), lambda b: (0, 0)),             # b2
                pl.BlockSpec((M3, M2 // 2), lambda b: (0, 0)),       # W3big (256, 224)
                pl.BlockSpec((M3, 1), lambda b: (0, 0)),             # b3
                pl.BlockSpec((1, M3 // 2), lambda b: (0, 0)),        # Wfc (1, 128)
                pl.BlockSpec(memory_space=pltpu.MemorySpace.SMEM),   # bfc scalar
            ],
            out_specs=pl.BlockSpec((1, block_b), lambda b: (0, b)),  # lane-dense (1, BB)
        ),
        compiler_params=pltpu.CompilerParams(
            dimension_semantics=("parallel",)),
    )(xt, w1, b1, w2, b2, w3, b3, wfc, bfc)
    return out[0, :B].reshape(B, 1)


def init_torch_params(key, input_size, seq_length, out_channels=(16, 32, 64)):
    """PyTorch-shaped params: kaiming_normal_-like weights, zero biases."""
    c1, c2, c3 = out_channels
    k0, k1, k2, k3 = jax.random.split(key, 4)
    w1 = jax.random.normal(k0, (c1, input_size, 1), jnp.float32) * (2.0 / (input_size * 1)) ** 0.5
    w2 = jax.random.normal(k1, (c2, c1, 3), jnp.float32) * (2.0 / (c1 * 3)) ** 0.5
    w3 = jax.random.normal(k2, (c3, c2, 3), jnp.float32) * (2.0 / (c2 * 3)) ** 0.5
    L_out = ((seq_length - 2) // 2 - 2) // 2
    in_feat = L_out * c3
    wfc = jax.random.normal(k3, (1, in_feat), jnp.float32) * (2.0 / in_feat) ** 0.5
    b1 = jnp.zeros((c1,), jnp.float32)
    b2 = jnp.zeros((c2,), jnp.float32)
    b3 = jnp.zeros((c3,), jnp.float32)
    bfc = jnp.zeros((1,), jnp.float32)
    return (w1, b1, w2, b2, w3, b3, wfc, bfc)


def pack_params(tparams, input_size, seq_length):
    """Fold each conv layer into one banded/block-diagonal matrix in the kernel layout."""
    w1, b1, w2, b2, w3, b3, wfc, bfc = (np.asarray(p, np.float32) for p in tparams)
    C1 = w1.shape[0]
    C2 = w2.shape[0]
    C3 = w3.shape[0]
    L = seq_length
    L2 = L - 2          # conv2 output length
    P1 = L2 // 2        # after first pool
    L3 = P1 - 2         # conv3 output length
    P2 = L3 // 2        # after second pool (floor drops last odd position)

    # Conv1(k=1): block-diagonal (C1*L, Cin*L); row = c1*L + l, col = cin*L + l.
    W1 = np.kron(w1[:, :, 0], np.eye(L, dtype=np.float32))
    B1 = np.repeat(b1, L)[:, None]

    # Conv2(k=3): banded (2*C2*P1, C1*L); first half rows = even positions t=2u,
    # second half = odd positions t=2u+1 (row within half = c2*P1 + u).
    W2 = np.zeros((2 * C2 * P1, C1 * L), np.float32)
    for parity in range(2):
        for c2i in range(C2):
            for u in range(P1):
                t = 2 * u + parity
                r = parity * C2 * P1 + c2i * P1 + u
                for j in range(3):
                    W2[r, np.arange(C1) * L + (t + j)] = w2[c2i, :, j]
    B2 = np.concatenate([np.repeat(b2, P1)] * 2)[:, None]

    # Conv3(k=3): banded (2*C3*P2, C2*P1); only the 2*P2 positions that survive
    # MaxPool1d(2) are materialized. Columns index the pooled layout c2*P1 + u.
    W3 = np.zeros((2 * C3 * P2, C2 * P1), np.float32)
    for parity in range(2):
        for c3i in range(C3):
            for v in range(P2):
                t = 2 * v + parity
                r = parity * C3 * P2 + c3i * P2 + v
                for j in range(3):
                    W3[r, np.arange(C2) * P1 + (t + j)] = w3[c3i, :, j]
    B3 = np.concatenate([np.repeat(b3, P2)] * 2)[:, None]

    Wfc = wfc                       # (1, C3*P2); pooled row order == flatten(c3*P2 + v)
    Bfc = bfc.reshape(1, 1)

    return tuple(jnp.asarray(a) for a in (W1, B1, W2, B2, W3, B3, Wfc, Bfc))


def ref_forward(x, tparams):
    """Pure-JAX reference mirroring the PyTorch module exactly."""
    w1, b1, w2, b2, w3, b3, wfc, bfc = tparams
    xc = jnp.transpose(x, (0, 2, 1))                      # (B, Cin, L), NCL like PyTorch

    def conv1d(h, w, b):
        K = w.shape[2]
        Lout = h.shape[2] - K + 1
        out = sum(jnp.einsum('bcl,dc->bdl', h[:, :, j:j + Lout], w[:, :, j])
                  for j in range(K))
        return out + b[None, :, None]

    def pool2(h):
        P = h.shape[2] // 2
        return jnp.max(h[:, :, :2 * P].reshape(h.shape[0], h.shape[1], P, 2), axis=3)

    h1 = jnp.maximum(conv1d(xc, w1, b1), 0.0)
    h2 = jnp.maximum(conv1d(h1, w2, b2), 0.0)
    p1 = pool2(h2)
    h3 = jnp.maximum(conv1d(p1, w3, b3), 0.0)
    p2 = pool2(h3)
    flat = p2.reshape(p2.shape[0], -1)                    # channel-major flatten, as in torch
    return flat @ wfc.T + bfc[None, :]


if __name__ == "__main__":
    B, seq_length, input_size = 2, 16, 4                  # forward() input is (B, seq, features)
    key = jax.random.PRNGKey(0)
    kx, kp = jax.random.split(key)
    x = jax.random.normal(kx, (B, seq_length, input_size), jnp.float32)

    tparams = init_torch_params(kp, input_size, seq_length)
    kparams = pack_params(tparams, input_size, seq_length)

    out = jax.block_until_ready(cnn_forward(x, kparams))
    ref = ref_forward(x, tparams)

    assert out.shape == (B, 1), out.shape
    assert jnp.allclose(out, ref, atol=1e-4, rtol=1e-4), (out, ref)
    print("KERNEL_OK")
</pallas_src>

<mosaic_0001>
module attributes {stable_mosaic.version = 11 : i64} {
  func.func @_cnn_kernel(%arg0: i32, %arg1: memref<64x256xf32, #tpu.memory_space<vmem>>, %arg2: memref<256x64xf32, #tpu.memory_space<vmem>>, %arg3: memref<256x1xf32, #tpu.memory_space<vmem>>, %arg4: memref<448x256xf32, #tpu.memory_space<vmem>>, %arg5: memref<448x1xf32, #tpu.memory_space<vmem>>, %arg6: memref<256x224xf32, #tpu.memory_space<vmem>>, %arg7: memref<256x1xf32, #tpu.memory_space<vmem>>, %arg8: memref<1x128xf32, #tpu.memory_space<vmem>>, %arg9: memref<1x1xf32, #tpu.memory_space<smem>>, %arg10: memref<1x256xf32, #tpu.memory_space<vmem>>) attributes {dimension_semantics = [#tpu.dimension_semantics<parallel>], iteration_bounds = array<i64: 1>, scalar_prefetch = 0 : i64, scratch_operands = 0 : i64, tpu.core_type = #tpu.core_type<tc>, window_params = [{transform_indices = @transform_0, window_bounds = array<i64: 64, 256>}, {pipeline_mode = #tpu.pipeline_mode<synchronous>, transform_indices = @transform_1, window_bounds = array<i64: 256, 64>}, {pipeline_mode = #tpu.pipeline_mode<synchronous>, transform_indices = @transform_2, window_bounds = array<i64: 256, 1>}, {pipeline_mode = #tpu.pipeline_mode<synchronous>, transform_indices = @transform_3, window_bounds = array<i64: 448, 256>}, {pipeline_mode = #tpu.pipeline_mode<synchronous>, transform_indices = @transform_4, window_bounds = array<i64: 448, 1>}, {pipeline_mode = #tpu.pipeline_mode<synchronous>, transform_indices = @transform_5, window_bounds = array<i64: 256, 224>}, {pipeline_mode = #tpu.pipeline_mode<synchronous>, transform_indices = @transform_6, window_bounds = array<i64: 256, 1>}, {pipeline_mode = #tpu.pipeline_mode<synchronous>, transform_indices = @transform_7, window_bounds = array<i64: 1, 128>}, {transform_indices = @transform_8, window_bounds = array<i64: 1, 1>}, {transform_indices = @transform_9, window_bounds = array<i64: 1, 256>}]} {
    %c0 = arith.constant 0 : index
    %c0_0 = arith.constant 0 : index
    %0 = vector.load %arg1[%c0, %c0_0] : memref<64x256xf32, #tpu.memory_space<vmem>>, vector<64x256xf32>
    %c0_1 = arith.constant 0 : index
    %c0_2 = arith.constant 0 : index
    %1 = vector.load %arg2[%c0_1, %c0_2] : memref<256x64xf32, #tpu.memory_space<vmem>>, vector<256x64xf32>
    %cst = arith.constant dense<0.000000e+00> : vector<256x256xf32>
    %2 = tpu.matmul %1, %0, %cst {dimension_numbers = #tpu.dot_dimension_numbers<[1], [0], [0], [1], [0, 0, 1, 1], [], []>} : vector<256x64xf32>, vector<64x256xf32>, vector<256x256xf32> -> vector<256x256xf32>
    %c0_3 = arith.constant 0 : index
    %c0_4 = arith.constant 0 : index
    %3 = vector.load %arg3[%c0_3, %c0_4] : memref<256x1xf32, #tpu.memory_space<vmem>>, vector<256x1xf32>
    %4 = vector.broadcast %3 : vector<256x1xf32> to vector<256x256xf32>
    %5 = arith.addf %2, %4 : vector<256x256xf32>
    %cst_5 = arith.constant 0.000000e+00 : f32
    %6 = vector.broadcast %cst_5 : f32 to vector<256x256xf32>
    %7 = arith.maximumf %5, %6 : vector<256x256xf32>
    %c0_6 = arith.constant 0 : index
    %c0_7 = arith.constant 0 : index
    %8 = vector.load %arg4[%c0_6, %c0_7] : memref<448x256xf32, #tpu.memory_space<vmem>>, vector<448x256xf32>
    %cst_8 = arith.constant dense<0.000000e+00> : vector<448x256xf32>
    %9 = tpu.matmul %8, %7, %cst_8 {dimension_numbers = #tpu.dot_dimension_numbers<[1], [0], [0], [1], [0, 0, 1, 1], [], []>} : vector<448x256xf32>, vector<256x256xf32>, vector<448x256xf32> -> vector<448x256xf32>
    %c0_9 = arith.constant 0 : index
    %c0_10 = arith.constant 0 : index
    %10 = vector.load %arg5[%c0_9, %c0_10] : memref<448x1xf32, #tpu.memory_space<vmem>>, vector<448x1xf32>
    %11 = vector.broadcast %10 : vector<448x1xf32> to vector<448x256xf32>
    %12 = arith.addf %9, %11 : vector<448x256xf32>
    %cst_11 = arith.constant 0.000000e+00 : f32
    %13 = vector.broadcast %cst_11 : f32 to vector<448x256xf32>
    %14 = arith.maximumf %12, %13 : vector<448x256xf32>
    %15 = vector.extract_strided_slice %14 {offsets = [0, 0], sizes = [224, 256], strides = [1, 1]} : vector<448x256xf32> to vector<224x256xf32>
    %16 = vector.extract_strided_slice %14 {offsets = [224, 0], sizes = [224, 256], strides = [1, 1]} : vector<448x256xf32> to vector<224x256xf32>
    %17 = arith.maximumf %15, %16 : vector<224x256xf32>
    %c0_12 = arith.constant 0 : index
    %c0_13 = arith.constant 0 : index
    %18 = vector.load %arg6[%c0_12, %c0_13] : memref<256x224xf32, #tpu.memory_space<vmem>>, vector<256x224xf32>
    %cst_14 = arith.constant dense<0.000000e+00> : vector<256x256xf32>
    %19 = tpu.matmul %18, %17, %cst_14 {dimension_numbers = #tpu.dot_dimension_numbers<[1], [0], [0], [1], [0, 0, 1, 1], [], []>} : vector<256x224xf32>, vector<224x256xf32>, vector<256x256xf32> -> vector<256x256xf32>
    %c0_15 = arith.constant 0 : index
    %c0_16 = arith.constant 0 : index
    %20 = vector.load %arg7[%c0_15, %c0_16] : memref<256x1xf32, #tpu.memory_space<vmem>>, vector<256x1xf32>
    %21 = vector.broadcast %20 : vector<256x1xf32> to vector<256x256xf32>
    %22 = arith.addf %19, %21 : vector<256x256xf32>
    %cst_17 = arith.constant 0.000000e+00 : f32
    %23 = vector.broadcast %cst_17 : f32 to vector<256x256xf32>
    %24 = arith.maximumf %22, %23 : vector<256x256xf32>
    %25 = vector.extract_strided_slice %24 {offsets = [0, 0], sizes = [128, 256], strides = [1, 1]} : vector<256x256xf32> to vector<128x256xf32>
    %26 = vector.extract_strided_slice %24 {offsets = [128, 0], sizes = [128, 256], strides = [1, 1]} : vector<256x256xf32> to vector<128x256xf32>
    %27 = arith.maximumf %25, %26 : vector<128x256xf32>
    %c0_18 = arith.constant 0 : index
    %c0_19 = arith.constant 0 : index
    %28 = vector.load %arg8[%c0_18, %c0_19] : memref<1x128xf32, #tpu.memory_space<vmem>>, vector<1x128xf32>
    %cst_20 = arith.constant dense<0.000000e+00> : vector<1x256xf32>
    %29 = tpu.matmul %28, %27, %cst_20 {dimension_numbers = #tpu.dot_dimension_numbers<[1], [0], [0], [1], [0, 0, 1, 1], [], []>} : vector<1x128xf32>, vector<128x256xf32>, vector<1x256xf32> -> vector<1x256xf32>
    %c0_21 = arith.constant 0 : index
    %c0_22 = arith.constant 0 : index
    %30 = memref.load %arg9[%c0_21, %c0_22] : memref<1x1xf32, #tpu.memory_space<smem>>
    %31 = vector.broadcast %30 : f32 to vector<1x256xf32>
    %32 = arith.addf %29, %31 : vector<1x256xf32>
    %c0_23 = arith.constant 0 : index
    %c0_24 = arith.constant 0 : index
    %33 = vector.load %arg10[%c0_23, %c0_24] : memref<1x256xf32, #tpu.memory_space<vmem>>, vector<1x256xf32>
    tpu.vector_store %arg10[%c0_23, %c0_24], %32 {strides = array<i32>} : memref<1x256xf32, #tpu.memory_space<vmem>>, vector<1x256xf32>,
    return
  }
  func.func @transform_0(%arg0: i32) -> (i32, i32) {
    %c0_i32 = arith.constant 0 : i32
    %c0_i32_0 = arith.constant 0 : i32
    return %c0_i32, %arg0 : i32, i32
  }
  func.func @transform_1(%arg0: i32) -> (i32, i32) {
    %c0_i32 = arith.constant 0 : i32
    %c0_i32_0 = arith.constant 0 : i32
    %c0_i32_1 = arith.constant 0 : i32
    return %c0_i32, %c0_i32_0 : i32, i32
  }
  func.func @transform_2(%arg0: i32) -> (i32, i32) {
    %c0_i32 = arith.constant 0 : i32
    %c0_i32_0 = arith.constant 0 : i32
    %c0_i32_1 = arith.constant 0 : i32
    return %c0_i32, %c0_i32_0 : i32, i32
  }
  func.func @transform_3(%arg0: i32) -> (i32, i32) {
    %c0_i32 = arith.constant 0 : i32
    %c0_i32_0 = arith.constant 0 : i32
    %c0_i32_1 = arith.constant 0 : i32
    return %c0_i32, %c0_i32_0 : i32, i32
  }
  func.func @transform_4(%arg0: i32) -> (i32, i32) {
    %c0_i32 = arith.constant 0 : i32
    %c0_i32_0 = arith.constant 0 : i32
    %c0_i32_1 = arith.constant 0 : i32
    return %c0_i32, %c0_i32_0 : i32, i32
  }
  func.func @transform_5(%arg0: i32) -> (i32, i32) {
    %c0_i32 = arith.constant 0 : i32
    %c0_i32_0 = arith.constant 0 : i32
    %c0_i32_1 = arith.constant 0 : i32
    return %c0_i32, %c0_i32_0 : i32, i32
  }
  func.func @transform_6(%arg0: i32) -> (i32, i32) {
    %c0_i32 = arith.constant 0 : i32
    %c0_i32_0 = arith.constant 0 : i32
    %c0_i32_1 = arith.constant 0 : i32
    return %c0_i32, %c0_i32_0 : i32, i32
  }
  func.func @transform_7(%arg0: i32) -> (i32, i32) {
    %c0_i32 = arith.constant 0 : i32
    %c0_i32_0 = arith.constant 0 : i32
    %c0_i32_1 = arith.constant 0 : i32
    return %c0_i32, %c0_i32_0 : i32, i32
  }
  func.func @transform_8(%arg0: i32) -> (i32, i32) {
    %c0_i32 = arith.constant 0 : i32
    %c0_i32_0 = arith.constant 0 : i32
    %c0_i32_1 = arith.constant 0 : i32
    return %c0_i32, %c0_i32_0 : i32, i32
  }
  func.func @transform_9(%arg0: i32) -> (i32, i32) {
    %c0_i32 = arith.constant 0 : i32
    %c0_i32_0 = arith.constant 0 : i32
    return %c0_i32, %arg0 : i32, i32
  }
}

</mosaic_0001>

<llo_original>
// kernel: tpu_custom_call.1
$region0: #{tpu_custom_call.1}
  #allocation0 [shape = 'u32[]', space=smem, size = 0x4, offset = 0x4, fixed_abs, tag = 'smem constant byte address 0x4 - core index']
  #allocation1 [shape = 'u32[144,128]{1,0:T(1,128)}', space=vmem, size = 0x12000, scoped, tag = 'internal scratch']
  #allocation2 [shape = 'f32[1,1]{1,0:T(1,128)S(6)}', space=smem, size = 0x200, scoped, tag = 'scoped memory for tpu_custom_call.1']
  %s0 = inlined_call_operand.vmem [shape: f32[64,256], index: 0, kind: input, shape index: {}]
  %s1 = inlined_call_operand.vmem [shape: f32[256,64], index: 1, kind: input, shape index: {}]
  %s2 = inlined_call_operand.vmem [shape: f32[256,1], index: 2, kind: input, shape index: {}]
  %s3 = inlined_call_operand.vmem [shape: f32[448,256], index: 3, kind: input, shape index: {}]
  %s4 = inlined_call_operand.vmem [shape: f32[448,1], index: 4, kind: input, shape index: {}]
  %s5 = inlined_call_operand.vmem [shape: f32[256,224], index: 5, kind: input, shape index: {}]
  %s6 = inlined_call_operand.vmem [shape: f32[256,1], index: 6, kind: input, shape index: {}]
  %s7 = inlined_call_operand.vmem [shape: f32[1,128], index: 7, kind: input, shape index: {}]
  %s8 = inlined_call_operand.<no memory space> [shape: f32[1,1], index: 8, kind: input, shape index: {}]
  %s9 = inlined_call_operand.hbm [shape: f32[1,256], index: 9, kind: output, shape index: {}]
  %s10 = sld [smem:[#allocation0]]
  $region46: #{tpu_custom_call.1} parent=0
    _
  %s12 = ssub.s32 1, %s10
  %s13 = scalar_select 0, %s12, %s10
  %14 = sst [smem:[#allocation2]] %s8
  $region1: #{tpu_custom_call.1} parent=0
    #allocation3 [shape = 'u8[1024]{0}', space=vmem, size = 0x400, scoped, tag = 'output window, operand 0, single buffered']
    #allocation4 [shape = 's32[1]{0}', space=sflag, size = 0x4, scoped, tag = 'scoped memory for tpu_custom_call.1']
    %15 = vsyncpa [#allocation4], 0
    // Predicated region
    $region2: #{tpu_custom_call.1} parent=1 // pred_check
      _
    $region3: #{tpu_custom_call.1} parent=1 // pred_check_branch
      %17 = sbr.rel (0) target = $region5
    $region4: #{tpu_custom_call.1} parent=1 // pred_region
      _
    $region5: #{tpu_custom_call.1} parent=1 // pred_fallthru
      _
    // Predicated region
    $region6: #{tpu_custom_call.1} parent=1 // pred_check
      _
    $region7: #{tpu_custom_call.1} parent=1 // pred_check_branch
      %19 = sbr.rel (0) target = $region9
    $region8: #{tpu_custom_call.1} parent=1 // pred_region
      _
    $region9: #{tpu_custom_call.1} parent=1 // pred_fallthru
      _
    // Predicated region
    $region10: #{tpu_custom_call.1} parent=1 // pred_check
      _
    $region11: #{tpu_custom_call.1} parent=1 // pred_check_branch
      %21 = sbr.rel (0) target = $region13
    $region12: #{tpu_custom_call.1} parent=1 // pred_region
      _
    $region13: #{tpu_custom_call.1} parent=1 // pred_fallthru
      _
    // Predicated region
    $region14: #{tpu_custom_call.1} parent=1 // pred_check
      _
    $region15: #{tpu_custom_call.1} parent=1 // pred_check_branch
      %23 = sbr.rel (0) target = $region17
    $region16: #{tpu_custom_call.1} parent=1 // pred_region
      _
    $region17: #{tpu_custom_call.1} parent=1 // pred_fallthru
      _
    // Predicated region
    $region18: #{tpu_custom_call.1} parent=1 // pred_check
      _
    $region19: #{tpu_custom_call.1} parent=1 // pred_check_branch
      %25 = sbr.rel (0) target = $region21
    $region20: #{tpu_custom_call.1} parent=1 // pred_region
      _
    $region21: #{tpu_custom_call.1} parent=1 // pred_fallthru
      _
    // Predicated region
    $region22: #{tpu_custom_call.1} parent=1 // pred_check
      _
    $region23: #{tpu_custom_call.1} parent=1 // pred_check_branch
      %27 = sbr.rel (0) target = $region25
    $region24: #{tpu_custom_call.1} parent=1 // pred_region
      _
    $region25: #{tpu_custom_call.1} parent=1 // pred_fallthru
      _
    // Predicated region
    $region26: #{tpu_custom_call.1} parent=1 // pred_check
      _
    $region27: #{tpu_custom_call.1} parent=1 // pred_check_branch
      %29 = sbr.rel (0) target = $region29
    $region28: #{tpu_custom_call.1} parent=1 // pred_region
      _
    $region29: #{tpu_custom_call.1} parent=1 // pred_fallthru
      _
    // Predicated region
    $region30: #{tpu_custom_call.1} parent=1 // pred_check
      _
    $region31: #{tpu_custom_call.1} parent=1 // pred_check_branch
      %31 = sbr.rel (0) target = $region33
    $region32: #{tpu_custom_call.1} parent=1 // pred_region
      _
    $region33: #{tpu_custom_call.1} parent=1 // pred_fallthru
      _
    // Predicated region
    $region34: #{tpu_custom_call.1} parent=1 // pred_check
      _
    $region35: #{tpu_custom_call.1} parent=1 // pred_check_branch
      %33 = sbr.rel (0) target = $region37
    $region36: #{tpu_custom_call.1} parent=1 // pred_region
      _
    $region37: #{tpu_custom_call.1} parent=1 // pred_fallthru
      _
    %v34 = vld [vmem:[%s0] sm:$0xff]
    %v35 = vld [vmem:[%s0 + $0x8] sm:$0xff]
    %v36 = vld [vmem:[%s0 + $0x10] sm:$0xff]
    %v37 = vld [vmem:[%s0 + $0x18] sm:$0xff]
    %v38 = vld [vmem:[%s0 + $0x20] sm:$0xff]
    %v39 = vld [vmem:[%s0 + $0x28] sm:$0xff]
    %v40 = vld [vmem:[%s0 + $0x30] sm:$0xff]
    %v41 = vld [vmem:[%s0 + $0x38] sm:$0xff]
    %v42 = vld [vmem:[%s0 + $0x40] sm:$0xff]
    %v43 = vld [vmem:[%s0 + $0x48] sm:$0xff]
    %v44 = vld [vmem:[%s0 + $0x50] sm:$0xff]
    %v45 = vld [vmem:[%s0 + $0x58] sm:$0xff]
    %v46 = vld [vmem:[%s0 + $0x60] sm:$0xff]
    %v47 = vld [vmem:[%s0 + $0x68] sm:$0xff]
    %v48 = vld [vmem:[%s0 + $0x70] sm:$0xff]
    %v49 = vld [vmem:[%s0 + $0x78] sm:$0xff]
    %v50 = vld [vmem:[%s1] sm:$0xff]
    %v51 = vld [vmem:[%s1 + $0x8] sm:$0xff]
    %v52 = vld [vmem:[%s1 + $0x10] sm:$0xff]
    %v53 = vld [vmem:[%s1 + $0x18] sm:$0xff]
    %v54 = vld [vmem:[%s1 + $0x20] sm:$0xff]
    %v55 = vld [vmem:[%s1 + $0x28] sm:$0xff]
    %v56 = vld [vmem:[%s1 + $0x30] sm:$0xff]
    %v57 = vld [vmem:[%s1 + $0x38] sm:$0xff]
    %v58 = vld [vmem:[%s1 + $0x40] sm:$0xff]
    %v59 = vld [vmem:[%s1 + $0x48] sm:$0xff]
    %v60 = vld [vmem:[%s1 + $0x50] sm:$0xff]
    %v61 = vld [vmem:[%s1 + $0x58] sm:$0xff]
    %v62 = vld [vmem:[%s1 + $0x60] sm:$0xff]
    %v63 = vld [vmem:[%s1 + $0x68] sm:$0xff]
    %v64 = vld [vmem:[%s1 + $0x70] sm:$0xff]
    %v65 = vld [vmem:[%s1 + $0x78] sm:$0xff]
    %v66 = vld [vmem:[%s1 + $0x80] sm:$0xff]
    %v67 = vld [vmem:[%s1 + $0x88] sm:$0xff]
    %v68 = vld [vmem:[%s1 + $0x90] sm:$0xff]
    %v69 = vld [vmem:[%s1 + $0x98] sm:$0xff]
    %v70 = vld [vmem:[%s1 + $0xa0] sm:$0xff]
    %v71 = vld [vmem:[%s1 + $0xa8] sm:$0xff]
    %v72 = vld [vmem:[%s1 + $0xb0] sm:$0xff]
    %v73 = vld [vmem:[%s1 + $0xb8] sm:$0xff]
    %v74 = vld [vmem:[%s1 + $0xc0] sm:$0xff]
    %v75 = vld [vmem:[%s1 + $0xc8] sm:$0xff]
    %v76 = vld [vmem:[%s1 + $0xd0] sm:$0xff]
    %v77 = vld [vmem:[%s1 + $0xd8] sm:$0xff]
    %v78 = vld [vmem:[%s1 + $0xe0] sm:$0xff]
    %v79 = vld [vmem:[%s1 + $0xe8] sm:$0xff]
    %v80 = vld [vmem:[%s1 + $0xf0] sm:$0xff]
    %v81 = vld [vmem:[%s1 + $0xf8] sm:$0xff]
    %v82 = vld [vmem:[%s2] sm:$0xff]
    %v83 = vld [vmem:[%s2 + $0x8] sm:$0xff]
    %v84 = vld [vmem:[%s2 + $0x10] sm:$0xff]
    %v85 = vld [vmem:[%s2 + $0x18] sm:$0xff]
    %v86 = vld [vmem:[%s2 + $0x20] sm:$0xff]
    %v87 = vld [vmem:[%s2 + $0x28] sm:$0xff]
    %v88 = vld [vmem:[%s2 + $0x30] sm:$0xff]
    %v89 = vld [vmem:[%s2 + $0x38] sm:$0xff]
    %v90 = vld [vmem:[%s2 + $0x40] sm:$0xff]
    %v91 = vld [vmem:[%s2 + $0x48] sm:$0xff]
    %v92 = vld [vmem:[%s2 + $0x50] sm:$0xff]
    %v93 = vld [vmem:[%s2 + $0x58] sm:$0xff]
    %v94 = vld [vmem:[%s2 + $0x60] sm:$0xff]
    %v95 = vld [vmem:[%s2 + $0x68] sm:$0xff]
    %v96 = vld [vmem:[%s2 + $0x70] sm:$0xff]
    %v97 = vld [vmem:[%s2 + $0x78] sm:$0xff]
    %v98 = vld [vmem:[%s2 + $0x80] sm:$0xff]
    %v99 = vld [vmem:[%s2 + $0x88] sm:$0xff]
    %v100 = vld [vmem:[%s2 + $0x90] sm:$0xff]
    %v101 = vld [vmem:[%s2 + $0x98] sm:$0xff]
    %v102 = vld [vmem:[%s2 + $0xa0] sm:$0xff]
    %v103 = vld [vmem:[%s2 + $0xa8] sm:$0xff]
    %v104 = vld [vmem:[%s2 + $0xb0] sm:$0xff]
    %v105 = vld [vmem:[%s2 + $0xb8] sm:$0xff]
    %v106 = vld [vmem:[%s2 + $0xc0] sm:$0xff]
    %v107 = vld [vmem:[%s2 + $0xc8] sm:$0xff]
    %v108 = vld [vmem:[%s2 + $0xd0] sm:$0xff]
    %v109 = vld [vmem:[%s2 + $0xd8] sm:$0xff]
    %v110 = vld [vmem:[%s2 + $0xe0] sm:$0xff]
    %v111 = vld [vmem:[%s2 + $0xe8] sm:$0xff]
    %v112 = vld [vmem:[%s2 + $0xf0] sm:$0xff]
    %v113 = vld [vmem:[%s2 + $0xf8] sm:$0xff]
    %115 = vset.pattern.permute.xlu0 0
    %116 = vperm.xlu0 %115, %v82
    %v117 = vpop.permute.xlu0 %116
    %120 = vset.pattern.permute.xlu0 0
    %121 = vperm.xlu0 %120, %v83
    %v122 = vpop.permute.xlu0 %121
    %125 = vset.pattern.permute.xlu0 0
    %126 = vperm.xlu0 %125, %v84
    %v127 = vpop.permute.xlu0 %126
    %130 = vset.pattern.permute.xlu0 0
    %131 = vperm.xlu0 %130, %v85
    %v132 = vpop.permute.xlu0 %131
    %135 = vset.pattern.permute.xlu0 0
    %136 = vperm.xlu0 %135, %v86
    %v137 = vpop.permute.xlu0 %136
    %140 = vset.pattern.permute.xlu0 0
    %141 = vperm.xlu0 %140, %v87
    %v142 = vpop.permute.xlu0 %141
    %145 = vset.pattern.permute.xlu0 0
    %146 = vperm.xlu0 %145, %v88
    %v147 = vpop.permute.xlu0 %146
    %150 = vset.pattern.permute.xlu0 0
    %151 = vperm.xlu0 %150, %v89
    %v152 = vpop.permute.xlu0 %151
    %155 = vset.pattern.permute.xlu0 0
    %156 = vperm.xlu0 %155, %v90
    %v157 = vpop.permute.xlu0 %156
    %160 = vset.pattern.permute.xlu0 0
    %161 = vperm.xlu0 %160, %v91
    %v162 = vpop.permute.xlu0 %161
    %165 = vset.pattern.permute.xlu0 0
    %166 = vperm.xlu0 %165, %v92
    %v167 = vpop.permute.xlu0 %166
    %170 = vset.pattern.permute.xlu0 0
    %171 = vperm.xlu0 %170, %v93
    %v172 = vpop.permute.xlu0 %171
    %175 = vset.pattern.permute.xlu0 0
    %176 = vperm.xlu0 %175, %v94
    %v177 = vpop.permute.xlu0 %176
    %180 = vset.pattern.permute.xlu0 0
    %181 = vperm.xlu0 %180, %v95
    %v182 = vpop.permute.xlu0 %181
    %185 = vset.pattern.permute.xlu0 0
    %186 = vperm.xlu0 %185, %v96
    %v187 = vpop.permute.xlu0 %186
    %190 = vset.pattern.permute.xlu0 0
    %191 = vperm.xlu0 %190, %v97
    %v192 = vpop.permute.xlu0 %191
    %195 = vset.pattern.permute.xlu0 0
    %196 = vperm.xlu0 %195, %v98
    %v197 = vpop.permute.xlu0 %196
    %200 = vset.pattern.permute.xlu0 0
    %201 = vperm.xlu0 %200, %v99
    %v202 = vpop.permute.xlu0 %201
    %205 = vset.pattern.permute.xlu0 0
    %206 = vperm.xlu0 %205, %v100
    %v207 = vpop.permute.xlu0 %206
    %210 = vset.pattern.permute.xlu0 0
    %211 = vperm.xlu0 %210, %v101
    %v212 = vpop.permute.xlu0 %211
    %215 = vset.pattern.permute.xlu0 0
    %216 = vperm.xlu0 %215, %v102
    %v217 = vpop.permute.xlu0 %216
    %220 = vset.pattern.permute.xlu0 0
    %221 = vperm.xlu0 %220, %v103
    %v222 = vpop.permute.xlu0 %221
    %225 = vset.pattern.permute.xlu0 0
    %226 = vperm.xlu0 %225, %v104
    %v227 = vpop.permute.xlu0 %226
    %230 = vset.pattern.permute.xlu0 0
    %231 = vperm.xlu0 %230, %v105
    %v232 = vpop.permute.xlu0 %231
    %235 = vset.pattern.permute.xlu0 0
    %236 = vperm.xlu0 %235, %v106
    %v237 = vpop.permute.xlu0 %236
    %240 = vset.pattern.permute.xlu0 0
    %241 = vperm.xlu0 %240, %v107
    %v242 = vpop.permute.xlu0 %241
    %245 = vset.pattern.permute.xlu0 0
    %246 = vperm.xlu0 %245, %v108
    %v247 = vpop.permute.xlu0 %246
    %250 = vset.pattern.permute.xlu0 0
    %251 = vperm.xlu0 %250, %v109
    %v252 = vpop.permute.xlu0 %251
    %255 = vset.pattern.permute.xlu0 0
    %256 = vperm.xlu0 %255, %v110
    %v257 = vpop.permute.xlu0 %256
    %260 = vset.pattern.permute.xlu0 0
    %261 = vperm.xlu0 %260, %v111
    %v262 = vpop.permute.xlu0 %261
    %265 = vset.pattern.permute.xlu0 0
    %266 = vperm.xlu0 %265, %v112
    %v267 = vpop.permute.xlu0 %266
    %270 = vset.pattern.permute.xlu0 0
    %271 = vperm.xlu0 %270, %v113
    %v272 = vpop.permute.xlu0 %271
    %vm274 = vcmask 523264
    %v276 = vsel %vm274, %v50, 0
    %v279 = vsel %vm274, %v51, 0
    %v282 = vsel %vm274, %v52, 0
    %v285 = vsel %vm274, %v53, 0
    %v288 = vsel %vm274, %v54, 0
    %v291 = vsel %vm274, %v55, 0
    %v294 = vsel %vm274, %v56, 0
    %v297 = vsel %vm274, %v57, 0
    %v300 = vsel %vm274, %v58, 0
    %v303 = vsel %vm274, %v59, 0
    %v306 = vsel %vm274, %v60, 0
    %v309 = vsel %vm274, %v61, 0
    %v312 = vsel %vm274, %v62, 0
    %v315 = vsel %vm274, %v63, 0
    %v318 = vsel %vm274, %v64, 0
    %v321 = vsel %vm274, %v65, 0
    %v324 = vsel %vm274, %v66, 0
    %v327 = vsel %vm274, %v67, 0
    %v330 = vsel %vm274, %v68, 0
    %v333 = vsel %vm274, %v69, 0
    %v336 = vsel %vm274, %v70, 0
    %v339 = vsel %vm274, %v71, 0
    %v342 = vsel %vm274, %v72, 0
    %v345 = vsel %vm274, %v73, 0
    %v348 = vsel %vm274, %v74, 0
    %v351 = vsel %vm274, %v75, 0
    %v354 = vsel %vm274, %v76, 0
    %v357 = vsel %vm274, %v77, 0
    %v360 = vsel %vm274, %v78, 0
    %v363 = vsel %vm274, %v79, 0
    %v366 = vsel %vm274, %v80, 0
    %v369 = vsel %vm274, %v81, 0
    %371 = vmatprep.subr.mxu0 %v35
    %372 = vmatpush1.msra.mxu0 %v34
    %373 = vmatprep.subr.mxu0 %v37
    %374 = vmatpush1.msra.mxu0 %v36
    %375 = vmatprep.subr.mxu0 %v39
    %376 = vmatpush1.msra.mxu0 %v38
    %377 = vmatprep.subr.mxu0 %v41
    %378 = vmatpush1.msra.mxu0 %v40
    %379 = vmatprep.subr.mxu0 %v43
    %380 = vmatpush1.msra.mxu0 %v42
    %381 = vmatprep.subr.mxu0 %v45
    %382 = vmatpush1.msra.mxu0 %v44
    %383 = vmatprep.subr.mxu0 %v47
    %384 = vmatpush1.msra.mxu0 %v46
    %385 = vmatprep.subr.mxu0 %v49
    %386 = vmatpush1.msra.mxu0 %v48
    %387 = vmatprep.subr.mxu0 0.0
    %388 = vmatpush1.msra.mxu0 0.0
    %389 = vmatprep.subr.mxu0 0.0
    %390 = vmatpush1.msra.mxu0 0.0
    %391 = vmatprep.subr.mxu0 0.0
    %392 = vmatpush1.msra.mxu0 0.0
    %393 = vmatprep.subr.mxu0 0.0
    %394 = vmatpush1.msra.mxu0 0.0
    %395 = vmatprep.subr.mxu0 0.0
    %396 = vmatpush1.msra.mxu0 0.0
    %397 = vmatprep.subr.mxu0 0.0
    %398 = vmatpush1.msra.mxu0 0.0
    %399 = vmatprep.subr.mxu0 0.0
    %400 = vmatpush1.msra.mxu0 0.0
    %401 = vmatprep.subr.mxu0 0.0
    %402 = vmatpush1.msra.mxu0 0.0
    %403 = vmatprep.subr.mxu0 0.0
    %404 = vmatpush1.msra.mxu0 0.0
    %405 = vmatprep.subr.mxu0 0.0
    %406 = vmatpush1.msra.mxu0 0.0
    %407 = vmatprep.subr.mxu0 0.0
    %408 = vmatpush1.msra.mxu0 0.0
    %409 = vmatprep.subr.mxu0 0.0
    %410 = vmatpush1.msra.mxu0 0.0
    %411 = vmatprep.subr.mxu0 0.0
    %412 = vmatpush1.msra.mxu0 0.0
    %413 = vmatprep.subr.mxu0 0.0
    %414 = vmatpush1.msra.mxu0 0.0
    %415 = vmatprep.subr.mxu0 0.0
    %416 = vmatpush1.msra.mxu0 0.0
    %417 = vmatprep.subr.mxu0 0.0
    %418 = vmatpush1.msra.mxu0 0.0
    %419 = vmatprep.subr.mxu0 0.0
    %420 = vmatpush1.msra.mxu0 0.0
    %421 = vmatprep.subr.mxu0 0.0
    %422 = vmatpush1.msra.mxu0 0.0
    %423 = vmatprep.subr.mxu0 0.0
    %424 = vmatpush1.msra.mxu0 0.0
    %425 = vmatprep.subr.mxu0 0.0
    %426 = vmatpush1.msra.mxu0 0.0
    %427 = vmatprep.subr.mxu0 0.0
    %428 = vmatpush1.msra.mxu0 0.0
    %429 = vmatprep.subr.mxu0 0.0
    %430 = vmatpush1.msra.mxu0 0.0
    %431 = vmatprep.subr.mxu0 0.0
    %432 = vmatpush1.msra.mxu0 0.0
    %433 = vmatprep.subr.mxu0 0.0
    %434 = vmatpush1.msra.mxu0 0.0
    %435 = vmatprep.mubr.f32.mxu0 0.0
    %436 = vmatmul.mubr.f32.gmra.mrb[0].mxu0 %v276
    %v437 = vpop.f32.mrb[0].mxu0
    %v438 = vadd.f32 %v117, %v437
    %v439 = vpop.f32.mrb[0].mxu0
    %v440 = vadd.f32 %v117, %v439
    %441 = vmatprep.mubr.f32.mxu0 0.0
    %442 = vmatmul.mubr.f32.gmra.mrb[0].mxu0 %v279
    %v443 = vpop.f32.mrb[0].mxu0
    %v444 = vadd.f32 %v122, %v443
    %v445 = vpop.f32.mrb[0].mxu0
    %v446 = vadd.f32 %v122, %v445
    %447 = vmatprep.mubr.f32.mxu0 0.0
    %448 = vmatmul.mubr.f32.gmra.mrb[0].mxu0 %v282
    %v449 = vpop.f32.mrb[0].mxu0
    %v450 = vadd.f32 %v127, %v449
    %v451 = vpop.f32.mrb[0].mxu0
    %v452 = vadd.f32 %v127, %v451
    %453 = vmatprep.mubr.f32.mxu0 0.0
    %454 = vmatmul.mubr.f32.gmra.mrb[0].mxu0 %v285
    %v455 = vpop.f32.mrb[0].mxu0
    %v456 = vadd.f32 %v132, %v455
    %v457 = vpop.f32.mrb[0].mxu0
    %v458 = vadd.f32 %v132, %v457
    %459 = vmatprep.mubr.f32.mxu0 0.0
    %460 = vmatmul.mubr.f32.gmra.mrb[0].mxu0 %v288
    %v461 = vpop.f32.mrb[0].mxu0
    %v462 = vadd.f32 %v137, %v461
    %v463 = vpop.f32.mrb[0].mxu0
    %v464 = vadd.f32 %v137, %v463
    %465 = vmatprep.mubr.f32.mxu0 0.0
    %466 = vmatmul.mubr.f32.gmra.mrb[0].mxu0 %v291
    %v467 = vpop.f32.mrb[0].mxu0
    %v468 = vadd.f32 %v142, %v467
    %v469 = vpop.f32.mrb[0].mxu0
    %v470 = vadd.f32 %v142, %v469
    %471 = vmatprep.mubr.f32.mxu0 0.0
    %472 = vmatmul.mubr.f32.gmra.mrb[0].mxu0 %v294
    %v473 = vpop.f32.mrb[0].mxu0
    %v474 = vadd.f32 %v147, %v473
    %v475 = vpop.f32.mrb[0].mxu0
    %v476 = vadd.f32 %v147, %v475
    %477 = vmatprep.mubr.f32.mxu0 0.0
    %478 = vmatmul.mubr.f32.gmra.mrb[0].mxu0 %v297
    %v479 = vpop.f32.mrb[0].mxu0
    %v480 = vadd.f32 %v152, %v479
    %v481 = vpop.f32.mrb[0].mxu0
    %v482 = vadd.f32 %v152, %v481
    %483 = vmatprep.mubr.f32.mxu0 0.0
    %484 = vmatmul.mubr.f32.gmra.mrb[0].mxu0 %v300
    %v485 = vpop.f32.mrb[0].mxu0
    %v486 = vadd.f32 %v157, %v485
    %v487 = vpop.f32.mrb[0].mxu0
    %v488 = vadd.f32 %v157, %v487
    %489 = vmatprep.mubr.f32.mxu0 0.0
    %490 = vmatmul.mubr.f32.gmra.mrb[0].mxu0 %v303
    %v491 = vpop.f32.mrb[0].mxu0
    %v492 = vadd.f32 %v162, %v491
    %v493 = vpop.f32.mrb[0].mxu0
    %v494 = vadd.f32 %v162, %v493
    %495 = vmatprep.mubr.f32.mxu0 0.0
    %496 = vmatmul.mubr.f32.gmra.mrb[0].mxu0 %v306
    %v497 = vpop.f32.mrb[0].mxu0
    %v498 = vadd.f32 %v167, %v497
    %v499 = vpop.f32.mrb[0].mxu0
    %v500 = vadd.f32 %v167, %v499
    %501 = vmatprep.mubr.f32.mxu0 0.0
    %502 = vmatmul.mubr.f32.gmra.mrb[0].mxu0 %v309
    %v503 = vpop.f32.mrb[0].mxu0
    %v504 = vadd.f32 %v172, %v503
    %v505 = vpop.f32.mrb[0].mxu0
    %v506 = vadd.f32 %v172, %v505
    %507 = vmatprep.mubr.f32.mxu0 0.0
    %508 = vmatmul.mubr.f32.gmra.mrb[0].mxu0 %v312
    %v509 = vpop.f32.mrb[0].mxu0
    %v510 = vadd.f32 %v177, %v509
    %v511 = vpop.f32.mrb[0].mxu0
    %v512 = vadd.f32 %v177, %v511
    %513 = vmatprep.mubr.f32.mxu0 0.0
    %514 = vmatmul.mubr.f32.gmra.mrb[0].mxu0 %v315
    %v515 = vpop.f32.mrb[0].mxu0
    %v516 = vadd.f32 %v182, %v515
    %v517 = vpop.f32.mrb[0].mxu0
    %v518 = vadd.f32 %v182, %v517
    %519 = vmatprep.mubr.f32.mxu0 0.0
    %520 = vmatmul.mubr.f32.gmra.mrb[0].mxu0 %v318
    %v521 = vpop.f32.mrb[0].mxu0
    %v522 = vadd.f32 %v187, %v521
    %v523 = vpop.f32.mrb[0].mxu0
    %v524 = vadd.f32 %v187, %v523
    %525 = vmatprep.mubr.f32.mxu0 0.0
    %526 = vmatmul.mubr.f32.gmra.mrb[0].mxu0 %v321
    %v527 = vpop.f32.mrb[0].mxu0
    %v528 = vadd.f32 %v192, %v527
    %v529 = vpop.f32.mrb[0].mxu0
    %v530 = vadd.f32 %v192, %v529
    %531 = vmatprep.mubr.f32.mxu0 0.0
    %532 = vmatmul.mubr.f32.gmra.mrb[0].mxu0 %v324
    %v533 = vpop.f32.mrb[0].mxu0
    %v534 = vadd.f32 %v197, %v533
    %v535 = vpop.f32.mrb[0].mxu0
    %v536 = vadd.f32 %v197, %v535
    %537 = vmatprep.mubr.f32.mxu0 0.0
    %538 = vmatmul.mubr.f32.gmra.mrb[0].mxu0 %v327
    %v539 = vpop.f32.mrb[0].mxu0
    %v540 = vadd.f32 %v202, %v539
    %v541 = vpop.f32.mrb[0].mxu0
    %v542 = vadd.f32 %v202, %v541
    %543 = vmatprep.mubr.f32.mxu0 0.0
    %544 = vmatmul.mubr.f32.gmra.mrb[0].mxu0 %v330
    %v545 = vpop.f32.mrb[0].mxu0
    %v546 = vadd.f32 %v207, %v545
    %v547 = vpop.f32.mrb[0].mxu0
    %v548 = vadd.f32 %v207, %v547
    %549 = vmatprep.mubr.f32.mxu0 0.0
    %550 = vmatmul.mubr.f32.gmra.mrb[0].mxu0 %v333
    %v551 = vpop.f32.mrb[0].mxu0
    %v552 = vadd.f32 %v212, %v551
    %v553 = vpop.f32.mrb[0].mxu0
    %v554 = vadd.f32 %v212, %v553
    %555 = vmatprep.mubr.f32.mxu0 0.0
    %556 = vmatmul.mubr.f32.gmra.mrb[0].mxu0 %v336
    %v557 = vpop.f32.mrb[0].mxu0
    %v558 = vadd.f32 %v217, %v557
    %v559 = vpop.f32.mrb[0].mxu0
    %v560 = vadd.f32 %v217, %v559
    %561 = vmatprep.mubr.f32.mxu0 0.0
    %562 = vmatmul.mubr.f32.gmra.mrb[0].mxu0 %v339
    %v563 = vpop.f32.mrb[0].mxu0
    %v564 = vadd.f32 %v222, %v563
    %v565 = vpop.f32.mrb[0].mxu0
    %v566 = vadd.f32 %v222, %v565
    %567 = vmatprep.mubr.f32.mxu0 0.0
    %568 = vmatmul.mubr.f32.gmra.mrb[0].mxu0 %v342
    %v569 = vpop.f32.mrb[0].mxu0
    %v570 = vadd.f32 %v227, %v569
    %v571 = vpop.f32.mrb[0].mxu0
    %v572 = vadd.f32 %v227, %v571
    %573 = vmatprep.mubr.f32.mxu0 0.0
    %574 = vmatmul.mubr.f32.gmra.mrb[0].mxu0 %v345
    %v575 = vpop.f32.mrb[0].mxu0
    %v576 = vadd.f32 %v232, %v575
    %v577 = vpop.f32.mrb[0].mxu0
    %v578 = vadd.f32 %v232, %v577
    %579 = vmatprep.mubr.f32.mxu0 0.0
    %580 = vmatmul.mubr.f32.gmra.mrb[0].mxu0 %v348
    %v581 = vpop.f32.mrb[0].mxu0
    %v582 = vadd.f32 %v237, %v581
    %v583 = vpop.f32.mrb[0].mxu0
    %v584 = vadd.f32 %v237, %v583
    %585 = vmatprep.mubr.f32.mxu0 0.0
    %586 = vmatmul.mubr.f32.gmra.mrb[0].mxu0 %v351
    %v587 = vpop.f32.mrb[0].mxu0
    %v588 = vadd.f32 %v242, %v587
    %v589 = vpop.f32.mrb[0].mxu0
    %v590 = vadd.f32 %v242, %v589
    %591 = vmatprep.mubr.f32.mxu0 0.0
    %592 = vmatmul.mubr.f32.gmra.mrb[0].mxu0 %v354
    %v593 = vpop.f32.mrb[0].mxu0
    %v594 = vadd.f32 %v247, %v593
    %v595 = vpop.f32.mrb[0].mxu0
    %v596 = vadd.f32 %v247, %v595
    %597 = vmatprep.mubr.f32.mxu0 0.0
    %598 = vmatmul.mubr.f32.gmra.mrb[0].mxu0 %v357
    %v599 = vpop.f32.mrb[0].mxu0
    %v600 = vadd.f32 %v252, %v599
    %v601 = vpop.f32.mrb[0].mxu0
    %v602 = vadd.f32 %v252, %v601
    %603 = vmatprep.mubr.f32.mxu0 0.0
    %604 = vmatmul.mubr.f32.gmra.mrb[0].mxu0 %v360
    %v605 = vpop.f32.mrb[0].mxu0
    %v606 = vadd.f32 %v257, %v605
    %v607 = vpop.f32.mrb[0].mxu0
    %v608 = vadd.f32 %v257, %v607
    %609 = vmatprep.mubr.f32.mxu0 0.0
    %610 = vmatmul.mubr.f32.gmra.mrb[0].mxu0 %v363
    %v611 = vpop.f32.mrb[0].mxu0
    %v612 = vadd.f32 %v262, %v611
    %v613 = vpop.f32.mrb[0].mxu0
    %v614 = vadd.f32 %v262, %v613
    %615 = vmatprep.mubr.f32.mxu0 0.0
    %616 = vmatmul.mubr.f32.gmra.mrb[0].mxu0 %v366
    %v617 = vpop.f32.mrb[0].mxu0
    %v618 = vadd.f32 %v267, %v617
    %v619 = vpop.f32.mrb[0].mxu0
    %v620 = vadd.f32 %v267, %v619
    %621 = vmatprep.mubr.f32.mxu0 0.0
    %622 = vmatmul.mubr.f32.gmra.mrb[0].mxu0 %v369
    %v623 = vpop.f32.mrb[0].mxu0
    %v624 = vadd.f32 %v272, %v623
    %v625 = vpop.f32.mrb[0].mxu0
    %v626 = vadd.f32 %v272, %v625
    %627 = vdwg.mxu0
    %v628 = vmax.f32 %v438, 0.0
    %v629 = vmax.f32 %v440, 0.0
    %v630 = vmax.f32 %v444, 0.0
    %v631 = vmax.f32 %v446, 0.0
    %v632 = vmax.f32 %v450, 0.0
    %v633 = vmax.f32 %v452, 0.0
    %v634 = vmax.f32 %v456, 0.0
    %v635 = vmax.f32 %v458, 0.0
    %v636 = vmax.f32 %v462, 0.0
    %v637 = vmax.f32 %v464, 0.0
    %v638 = vmax.f32 %v468, 0.0
    %v639 = vmax.f32 %v470, 0.0
    %v640 = vmax.f32 %v474, 0.0
    %v641 = vmax.f32 %v476, 0.0
    %v642 = vmax.f32 %v480, 0.0
    %v643 = vmax.f32 %v482, 0.0
    %v644 = vmax.f32 %v486, 0.0
    %v645 = vmax.f32 %v488, 0.0
    %v646 = vmax.f32 %v492, 0.0
    %v647 = vmax.f32 %v494, 0.0
    %v648 = vmax.f32 %v498, 0.0
    %v649 = vmax.f32 %v500, 0.0
    %v650 = vmax.f32 %v504, 0.0
    %v651 = vmax.f32 %v506, 0.0
    %v652 = vmax.f32 %v510, 0.0
    %v653 = vmax.f32 %v512, 0.0
    %v654 = vmax.f32 %v516, 0.0
    %v655 = vmax.f32 %v518, 0.0
    %v656 = vmax.f32 %v522, 0.0
    %v657 = vmax.f32 %v524, 0.0
    %v658 = vmax.f32 %v528, 0.0
    %v659 = vmax.f32 %v530, 0.0
    %v660 = vmax.f32 %v534, 0.0
    %v661 = vmax.f32 %v536, 0.0
    %v662 = vmax.f32 %v540, 0.0
    %v663 = vmax.f32 %v542, 0.0
    %v664 = vmax.f32 %v546, 0.0
    %v665 = vmax.f32 %v548, 0.0
    %v666 = vmax.f32 %v552, 0.0
    %v667 = vmax.f32 %v554, 0.0
    %v668 = vmax.f32 %v558, 0.0
    %v669 = vmax.f32 %v560, 0.0
    %v670 = vmax.f32 %v564, 0.0
    %v671 = vmax.f32 %v566, 0.0
    %v672 = vmax.f32 %v570, 0.0
    %v673 = vmax.f32 %v572, 0.0
    %v674 = vmax.f32 %v576, 0.0
    %v675 = vmax.f32 %v578, 0.0
    %v676 = vmax.f32 %v582, 0.0
    %v677 = vmax.f32 %v584, 0.0
    %v678 = vmax.f32 %v588, 0.0
    %v679 = vmax.f32 %v590, 0.0
    %v680 = vmax.f32 %v594, 0.0
    %v681 = vmax.f32 %v596, 0.0
    %v682 = vmax.f32 %v600, 0.0
    %v683 = vmax.f32 %v602, 0.0
    %v684 = vmax.f32 %v606, 0.0
    %v685 = vmax.f32 %v608, 0.0
    %v686 = vmax.f32 %v612, 0.0
    %v687 = vmax.f32 %v614, 0.0
    %v688 = vmax.f32 %v618, 0.0
    %v689 = vmax.f32 %v620, 0.0
    %v690 = vmax.f32 %v624, 0.0
    %v691 = vmax.f32 %v626, 0.0
    %v692 = vld [vmem:[%s3] sm:$0xff]
    %v693 = vld [vmem:[%s3 + $0x8] sm:$0xff]
    %v694 = vld [vmem:[%s3 + $0x10] sm:$0xff]
    %v695 = vld [vmem:[%s3 + $0x18] sm:$0xff]
    %v696 = vld [vmem:[%s3 + $0x20] sm:$0xff]
    %v697 = vld [vmem:[%s3 + $0x28] sm:$0xff]
    %v698 = vld [vmem:[%s3 + $0x30] sm:$0xff]
    %v699 = vld [vmem:[%s3 + $0x38] sm:$0xff]
    %v700 = vld [vmem:[%s3 + $0x40] sm:$0xff]
    %v701 = vld [vmem:[%s3 + $0x48] sm:$0xff]
    %v702 = vld [vmem:[%s3 + $0x50] sm:$0xff]
    %v703 = vld [vmem:[%s3 + $0x58] sm:$0xff]
    %v704 = vld [vmem:[%s3 + $0x60] sm:$0xff]
    %v705 = vld [vmem:[%s3 + $0x68] sm:$0xff]
    %v706 = vld [vmem:[%s3 + $0x70] sm:$0xff]
    %v707 = vld [vmem:[%s3 + $0x78] sm:$0xff]
    %v708 = vld [vmem:[%s3 + $0x80] sm:$0xff]
    %v709 = vld [vmem:[%s3 + $0x88] sm:$0xff]
    %v710 = vld [vmem:[%s3 + $0x90] sm:$0xff]
    %v711 = vld [vmem:[%s3 + $0x98] sm:$0xff]
    %v712 = vld [vmem:[%s3 + $0xa0] sm:$0xff]
    %v713 = vld [vmem:[%s3 + $0xa8] sm:$0xff]
    %v714 = vld [vmem:[%s3 + $0xb0] sm:$0xff]
    %v715 = vld [vmem:[%s3 + $0xb8] sm:$0xff]
    %v716 = vld [vmem:[%s3 + $0xc0] sm:$0xff]
    %v717 = vld [vmem:[%s3 + $0xc8] sm:$0xff]
    %v718 = vld [vmem:[%s3 + $0xd0] sm:$0xff]
    %v719 = vld [vmem:[%s3 + $0xd8] sm:$0xff]
    %v720 = vld [vmem:[%s3 + $0xe0] sm:$0xff]
    %v721 = vld [vmem:[%s3 + $0xe8] sm:$0xff]
    %v722 = vld [vmem:[%s3 + $0xf0] sm:$0xff]
    %v723 = vld [vmem:[%s3 + $0xf8] sm:$0xff]
    %v724 = vld [vmem:[%s3 + $0x100] sm:$0xff]
    %v725 = vld [vmem:[%s3 + $0x108] sm:$0xff]
    %v726 = vld [vmem:[%s3 + $0x110] sm:$0xff]
    %v727 = vld [vmem:[%s3 + $0x118] sm:$0xff]
    %v728 = vld [vmem:[%s3 + $0x120] sm:$0xff]
    %v729 = vld [vmem:[%s3 + $0x128] sm:$0xff]
    %v730 = vld [vmem:[%s3 + $0x130] sm:$0xff]
    %v731 = vld [vmem:[%s3 + $0x138] sm:$0xff]
    %v732 = vld [vmem:[%s3 + $0x140] sm:$0xff]
    %v733 = vld [vmem:[%s3 + $0x148] sm:$0xff]
    %v734 = vld [vmem:[%s3 + $0x150] sm:$0xff]
    %v735 = vld [vmem:[%s3 + $0x158] sm:$0xff]
    %v736 = vld [vmem:[%s3 + $0x160] sm:$0xff]
    %v737 = vld [vmem:[%s3 + $0x168] sm:$0xff]
    %v738 = vld [vmem:[%s3 + $0x170] sm:$0xff]
    %v739 = vld [vmem:[%s3 + $0x178] sm:$0xff]
    %v740 = vld [vmem:[%s3 + $0x180] sm:$0xff]
    %v741 = vld [vmem:[%s3 + $0x188] sm:$0xff]
    %v742 = vld [vmem:[%s3 + $0x190] sm:$0xff]
    %v743 = vld [vmem:[%s3 + $0x198] sm:$0xff]
    %v744 = vld [vmem:[%s3 + $0x1a0] sm:$0xff]
    %v745 = vld [vmem:[%s3 + $0x1a8] sm:$0xff]
    %v746 = vld [vmem:[%s3 + $0x1b0] sm:$0xff]
    %v747 = vld [vmem:[%s3 + $0x1b8] sm:$0xff]
    %v748 = vld [vmem:[%s3 + $0x1c0] sm:$0xff]
    %v749 = vld [vmem:[%s3 + $0x1c8] sm:$0xff]
    %v750 = vld [vmem:[%s3 + $0x1d0] sm:$0xff]
    %v751 = vld [vmem:[%s3 + $0x1d8] sm:$0xff]
    %v752 = vld [vmem:[%s3 + $0x1e0] sm:$0xff]
    %v753 = vld [vmem:[%s3 + $0x1e8] sm:$0xff]
    %v754 = vld [vmem:[%s3 + $0x1f0] sm:$0xff]
    %v755 = vld [vmem:[%s3 + $0x1f8] sm:$0xff]
    %v756 = vld [vmem:[%s3 + $0x200] sm:$0xff]
    %v757 = vld [vmem:[%s3 + $0x208] sm:$0xff]
    %v758 = vld [vmem:[%s3 + $0x210] sm:$0xff]
    %v759 = vld [vmem:[%s3 + $0x218] sm:$0xff]
    %v760 = vld [vmem:[%s3 + $0x220] sm:$0xff]
    %v761 = vld [vmem:[%s3 + $0x228] sm:$0xff]
    %v762 = vld [vmem:[%s3 + $0x230] sm:$0xff]
    %v763 = vld [vmem:[%s3 + $0x238] sm:$0xff]
    %v764 = vld [vmem:[%s3 + $0x240] sm:$0xff]
    %v765 = vld [vmem:[%s3 + $0x248] sm:$0xff]
    %v766 = vld [vmem:[%s3 + $0x250] sm:$0xff]
    %v767 = vld [vmem:[%s3 + $0x258] sm:$0xff]
    %v768 = vld [vmem:[%s3 + $0x260] sm:$0xff]
    %v769 = vld [vmem:[%s3 + $0x268] sm:$0xff]
    %v770 = vld [vmem:[%s3 + $0x270] sm:$0xff]
    %v771 = vld [vmem:[%s3 + $0x278] sm:$0xff]
    %v772 = vld [vmem:[%s3 + $0x280] sm:$0xff]
    %v773 = vld [vmem:[%s3 + $0x288] sm:$0xff]
    %v774 = vld [vmem:[%s3 + $0x290] sm:$0xff]
    %v775 = vld [vmem:[%s3 + $0x298] sm:$0xff]
    %v776 = vld [vmem:[%s3 + $0x2a0] sm:$0xff]
    %v777 = vld [vmem:[%s3 + $0x2a8] sm:$0xff]
    %v778 = vld [vmem:[%s3 + $0x2b0] sm:$0xff]
    %v779 = vld [vmem:[%s3 + $0x2b8] sm:$0xff]
    %v780 = vld [vmem:[%s3 + $0x2c0] sm:$0xff]
    %v781 = vld [vmem:[%s3 + $0x2c8] sm:$0xff]
    %v782 = vld [vmem:[%s3 + $0x2d0] sm:$0xff]
    %v783 = vld [vmem:[%s3 + $0x2d8] sm:$0xff]
    %v784 = vld [vmem:[%s3 + $0x2e0] sm:$0xff]
    %v785 = vld [vmem:[%s3 + $0x2e8] sm:$0xff]
    %v786 = vld [vmem:[%s3 + $0x2f0] sm:$0xff]
    %v787 = vld [vmem:[%s3 + $0x2f8] sm:$0xff]
    %v788 = vld [vmem:[%s3 + $0x300] sm:$0xff]
    %v789 = vld [vmem:[%s3 + $0x308] sm:$0xff]
    %v790 = vld [vmem:[%s3 + $0x310] sm:$0xff]
    %v791 = vld [vmem:[%s3 + $0x318] sm:$0xff]
    %v792 = vld [vmem:[%s3 + $0x320] sm:$0xff]
    %v793 = vld [vmem:[%s3 + $0x328] sm:$0xff]
    %v794 = vld [vmem:[%s3 + $0x330] sm:$0xff]
    %v795 = vld [vmem:[%s3 + $0x338] sm:$0xff]
    %v796 = vld [vmem:[%s3 + $0x340] sm:$0xff]
    %v797 = vld [vmem:[%s3 + $0x348] sm:$0xff]
    %v798 = vld [vmem:[%s3 + $0x350] sm:$0xff]
    %v799 = vld [vmem:[%s3 + $0x358] sm:$0xff]
    %v800 = vld [vmem:[%s3 + $0x360] sm:$0xff]
    %v801 = vld [vmem:[%s3 + $0x368] sm:$0xff]
    %v802 = vld [vmem:[%s3 + $0x370] sm:$0xff]
    %v803 = vld [vmem:[%s3 + $0x378] sm:$0xff]
    %v804 = vld [vmem:[%s4] sm:$0xff]
    %v805 = vld [vmem:[%s4 + $0x8] sm:$0xff]
    %v806 = vld [vmem:[%s4 + $0x10] sm:$0xff]
    %v807 = vld [vmem:[%s4 + $0x18] sm:$0xff]
    %v808 = vld [vmem:[%s4 + $0x20] sm:$0xff]
    %v809 = vld [vmem:[%s4 + $0x28] sm:$0xff]
    %v810 = vld [vmem:[%s4 + $0x30] sm:$0xff]
    %v811 = vld [vmem:[%s4 + $0x38] sm:$0xff]
    %v812 = vld [vmem:[%s4 + $0x40] sm:$0xff]
    %v813 = vld [vmem:[%s4 + $0x48] sm:$0xff]
    %v814 = vld [vmem:[%s4 + $0x50] sm:$0xff]
    %v815 = vld [vmem:[%s4 + $0x58] sm:$0xff]
    %v816 = vld [vmem:[%s4 + $0x60] sm:$0xff]
    %v817 = vld [vmem:[%s4 + $0x68] sm:$0xff]
    %v818 = vld [vmem:[%s4 + $0x70] sm:$0xff]
    %v819 = vld [vmem:[%s4 + $0x78] sm:$0xff]
    %v820 = vld [vmem:[%s4 + $0x80] sm:$0xff]
    %v821 = vld [vmem:[%s4 + $0x88] sm:$0xff]
    %v822 = vld [vmem:[%s4 + $0x90] sm:$0xff]
    %v823 = vld [vmem:[%s4 + $0x98] sm:$0xff]
    %v824 = vld [vmem:[%s4 + $0xa0] sm:$0xff]
    %v825 = vld [vmem:[%s4 + $0xa8] sm:$0xff]
    %v826 = vld [vmem:[%s4 + $0xb0] sm:$0xff]
    %v827 = vld [vmem:[%s4 + $0xb8] sm:$0xff]
    %v828 = vld [vmem:[%s4 + $0xc0] sm:$0xff]
    %v829 = vld [vmem:[%s4 + $0xc8] sm:$0xff]
    %v830 = vld [vmem:[%s4 + $0xd0] sm:$0xff]
    %v831 = vld [vmem:[%s4 + $0xd8] sm:$0xff]
    %v832 = vld [vmem:[%s4 + $0xe0] sm:$0xff]
    %v833 = vld [vmem:[%s4 + $0xe8] sm:$0xff]
    %v834 = vld [vmem:[%s4 + $0xf0] sm:$0xff]
    %v835 = vld [vmem:[%s4 + $0xf8] sm:$0xff]
    %v836 = vld [vmem:[%s4 + $0x100] sm:$0xff]
    %v837 = vld [vmem:[%s4 + $0x108] sm:$0xff]
    %v838 = vld [vmem:[%s4 + $0x110] sm:$0xff]
    %v839 = vld [vmem:[%s4 + $0x118] sm:$0xff]
    %v840 = vld [vmem:[%s4 + $0x120] sm:$0xff]
    %v841 = vld [vmem:[%s4 + $0x128] sm:$0xff]
    %v842 = vld [vmem:[%s4 + $0x130] sm:$0xff]
    %v843 = vld [vmem:[%s4 + $0x138] sm:$0xff]
    %v844 = vld [vmem:[%s4 + $0x140] sm:$0xff]
    %v845 = vld [vmem:[%s4 + $0x148] sm:$0xff]
    %v846 = vld [vmem:[%s4 + $0x150] sm:$0xff]
    %v847 = vld [vmem:[%s4 + $0x158] sm:$0xff]
    %v848 = vld [vmem:[%s4 + $0x160] sm:$0xff]
    %v849 = vld [vmem:[%s4 + $0x168] sm:$0xff]
    %v850 = vld [vmem:[%s4 + $0x170] sm:$0xff]
    %v851 = vld [vmem:[%s4 + $0x178] sm:$0xff]
    %v852 = vld [vmem:[%s4 + $0x180] sm:$0xff]
    %v853 = vld [vmem:[%s4 + $0x188] sm:$0xff]
    %v854 = vld [vmem:[%s4 + $0x190] sm:$0xff]
    %v855 = vld [vmem:[%s4 + $0x198] sm:$0xff]
    %v856 = vld [vmem:[%s4 + $0x1a0] sm:$0xff]
    %v857 = vld [vmem:[%s4 + $0x1a8] sm:$0xff]
    %v858 = vld [vmem:[%s4 + $0x1b0] sm:$0xff]
    %v859 = vld [vmem:[%s4 + $0x1b8] sm:$0xff]
    %861 = vset.pattern.permute.xlu0 0
    %862 = vperm.xlu0 %861, %v804
    %v863 = vpop.permute.xlu0 %862
    %866 = vset.pattern.permute.xlu0 0
    %867 = vperm.xlu0 %866, %v805
    %v868 = vpop.permute.xlu0 %867
    %871 = vset.pattern.permute.xlu0 0
    %872 = vperm.xlu0 %871, %v806
    %v873 = vpop.permute.xlu0 %872
    %876 = vset.pattern.permute.xlu0 0
    %877 = vperm.xlu0 %876, %v807
    %v878 = vpop.permute.xlu0 %877
    %881 = vset.pattern.permute.xlu0 0
    %882 = vperm.xlu0 %881, %v808
    %v883 = vpop.permute.xlu0 %882
    %886 = vset.pattern.permute.xlu0 0
    %887 = vperm.xlu0 %886, %v809
    %v888 = vpop.permute.xlu0 %887
    %891 = vset.pattern.permute.xlu0 0
    %892 = vperm.xlu0 %891, %v810
    %v893 = vpop.permute.xlu0 %892
    %896 = vset.pattern.permute.xlu0 0
    %897 = vperm.xlu0 %896, %v811
    %v898 = vpop.permute.xlu0 %897
    %901 = vset.pattern.permute.xlu0 0
    %902 = vperm.xlu0 %901, %v812
    %v903 = vpop.permute.xlu0 %902
    %906 = vset.pattern.permute.xlu0 0
    %907 = vperm.xlu0 %906, %v813
    %v908 = vpop.permute.xlu0 %907
    %911 = vset.pattern.permute.xlu0 0
    %912 = vperm.xlu0 %911, %v814
    %v913 = vpop.permute.xlu0 %912
    %916 = vset.pattern.permute.xlu0 0
    %917 = vperm.xlu0 %916, %v815
    %v918 = vpop.permute.xlu0 %917
    %921 = vset.pattern.permute.xlu0 0
    %922 = vperm.xlu0 %921, %v816
    %v923 = vpop.permute.xlu0 %922
    %926 = vset.pattern.permute.xlu0 0
    %927 = vperm.xlu0 %926, %v817
    %v928 = vpop.permute.xlu0 %927
    %931 = vset.pattern.permute.xlu0 0
    %932 = vperm.xlu0 %931, %v818
    %v933 = vpop.permute.xlu0 %932
    %936 = vset.pattern.permute.xlu0 0
    %937 = vperm.xlu0 %936, %v819
    %v938 = vpop.permute.xlu0 %937
    %941 = vset.pattern.permute.xlu0 0
    %942 = vperm.xlu0 %941, %v820
    %v943 = vpop.permute.xlu0 %942
    %946 = vset.pattern.permute.xlu0 0
    %947 = vperm.xlu0 %946, %v821
    %v948 = vpop.permute.xlu0 %947
    %951 = vset.pattern.permute.xlu0 0
    %952 = vperm.xlu0 %951, %v822
    %v953 = vpop.permute.xlu0 %952
    %956 = vset.pattern.permute.xlu0 0
    %957 = vperm.xlu0 %956, %v823
    %v958 = vpop.permute.xlu0 %957
    %961 = vset.pattern.permute.xlu0 0
    %962 = vperm.xlu0 %961, %v824
    %v963 = vpop.permute.xlu0 %962
    %966 = vset.pattern.permute.xlu0 0
    %967 = vperm.xlu0 %966, %v825
    %v968 = vpop.permute.xlu0 %967
    %971 = vset.pattern.permute.xlu0 0
    %972 = vperm.xlu0 %971, %v826
    %v973 = vpop.permute.xlu0 %972
    %976 = vset.pattern.permute.xlu0 0
    %977 = vperm.xlu0 %976, %v827
    %v978 = vpop.permute.xlu0 %977
    %981 = vset.pattern.permute.xlu0 0
    %982 = vperm.xlu0 %981, %v828
    %v983 = vpop.permute.xlu0 %982
    %986 = vset.pattern.permute.xlu0 0
    %987 = vperm.xlu0 %986, %v829
    %v988 = vpop.permute.xlu0 %987
    %991 = vset.pattern.permute.xlu0 0
    %992 = vperm.xlu0 %991, %v830
    %v993 = vpop.permute.xlu0 %992
    %996 = vset.pattern.permute.xlu0 0
    %997 = vperm.xlu0 %996, %v831
    %v998 = vpop.permute.xlu0 %997
    %1001 = vset.pattern.permute.xlu0 0
    %1002 = vperm.xlu0 %1001, %v832
    %v1003 = vpop.permute.xlu0 %1002
    %1006 = vset.pattern.permute.xlu0 0
    %1007 = vperm.xlu0 %1006, %v833
    %v1008 = vpop.permute.xlu0 %1007
    %1011 = vset.pattern.permute.xlu0 0
    %1012 = vperm.xlu0 %1011, %v834
    %v1013 = vpop.permute.xlu0 %1012
    %1016 = vset.pattern.permute.xlu0 0
    %1017 = vperm.xlu0 %1016, %v835
    %v1018 = vpop.permute.xlu0 %1017
    %1021 = vset.pattern.permute.xlu0 0
    %1022 = vperm.xlu0 %1021, %v836
    %v1023 = vpop.permute.xlu0 %1022
    %1026 = vset.pattern.permute.xlu0 0
    %1027 = vperm.xlu0 %1026, %v837
    %v1028 = vpop.permute.xlu0 %1027
    %1031 = vset.pattern.permute.xlu0 0
    %1032 = vperm.xlu0 %1031, %v838
    %v1033 = vpop.permute.xlu0 %1032
    %1036 = vset.pattern.permute.xlu0 0
    %1037 = vperm.xlu0 %1036, %v839
    %v1038 = vpop.permute.xlu0 %1037
    %1041 = vset.pattern.permute.xlu0 0
    %1042 = vperm.xlu0 %1041, %v840
    %v1043 = vpop.permute.xlu0 %1042
    %1046 = vset.pattern.permute.xlu0 0
    %1047 = vperm.xlu0 %1046, %v841
    %v1048 = vpop.permute.xlu0 %1047
    %1051 = vset.pattern.permute.xlu0 0
    %1052 = vperm.xlu0 %1051, %v842
    %v1053 = vpop.permute.xlu0 %1052
    %1056 = vset.pattern.permute.xlu0 0
    %1057 = vperm.xlu0 %1056, %v843
    %v1058 = vpop.permute.xlu0 %1057
    %1061 = vset.pattern.permute.xlu0 0
    %1062 = vperm.xlu0 %1061, %v844
    %v1063 = vpop.permute.xlu0 %1062
    %1066 = vset.pattern.permute.xlu0 0
    %1067 = vperm.xlu0 %1066, %v845
    %v1068 = vpop.permute.xlu0 %1067
    %1071 = vset.pattern.permute.xlu0 0
    %1072 = vperm.xlu0 %1071, %v846
    %v1073 = vpop.permute.xlu0 %1072
    %1076 = vset.pattern.permute.xlu0 0
    %1077 = vperm.xlu0 %1076, %v847
    %v1078 = vpop.permute.xlu0 %1077
    %1081 = vset.pattern.permute.xlu0 0
    %1082 = vperm.xlu0 %1081, %v848
    %v1083 = vpop.permute.xlu0 %1082
    %1086 = vset.pattern.permute.xlu0 0
    %1087 = vperm.xlu0 %1086, %v849
    %v1088 = vpop.permute.xlu0 %1087
    %1091 = vset.pattern.permute.xlu0 0
    %1092 = vperm.xlu0 %1091, %v850
    %v1093 = vpop.permute.xlu0 %1092
    %1096 = vset.pattern.permute.xlu0 0
    %1097 = vperm.xlu0 %1096, %v851
    %v1098 = vpop.permute.xlu0 %1097
    %1101 = vset.pattern.permute.xlu0 0
    %1102 = vperm.xlu0 %1101, %v852
    %v1103 = vpop.permute.xlu0 %1102
    %1106 = vset.pattern.permute.xlu0 0
    %1107 = vperm.xlu0 %1106, %v853
    %v1108 = vpop.permute.xlu0 %1107
    %1111 = vset.pattern.permute.xlu0 0
    %1112 = vperm.xlu0 %1111, %v854
    %v1113 = vpop.permute.xlu0 %1112
    %1116 = vset.pattern.permute.xlu0 0
    %1117 = vperm.xlu0 %1116, %v855
    %v1118 = vpop.permute.xlu0 %1117
    %1121 = vset.pattern.permute.xlu0 0
    %1122 = vperm.xlu0 %1121, %v856
    %v1123 = vpop.permute.xlu0 %1122
    %1126 = vset.pattern.permute.xlu0 0
    %1127 = vperm.xlu0 %1126, %v857
    %v1128 = vpop.permute.xlu0 %1127
    %1131 = vset.pattern.permute.xlu0 0
    %1132 = vperm.xlu0 %1131, %v858
    %v1133 = vpop.permute.xlu0 %1132
    %1136 = vset.pattern.permute.xlu0 0
    %1137 = vperm.xlu0 %1136, %v859
    %v1138 = vpop.permute.xlu0 %1137
    %1140 = vmatprep.subr.mxu0 %v629
    %1141 = vmatpush1.msra.mxu0 %v628
    %1142 = vmatprep.subr.mxu0 %v631
    %1143 = vmatpush1.msra.mxu0 %v630
    %1144 = vmatprep.subr.mxu0 %v633
    %1145 = vmatpush1.msra.mxu0 %v632
    %1146 = vmatprep.subr.mxu0 %v635
    %1147 = vmatpush1.msra.mxu0 %v634
    %1148 = vmatprep.subr.mxu0 %v637
    %1149 = vmatpush1.msra.mxu0 %v636
    %1150 = vmatprep.subr.mxu0 %v639
    %1151 = vmatpush1.msra.mxu0 %v638
    %1152 = vmatprep.subr.mxu0 %v641
    %1153 = vmatpush1.msra.mxu0 %v640
    %1154 = vmatprep.subr.mxu0 %v643
    %1155 = vmatpush1.msra.mxu0 %v642
    %1156 = vmatprep.subr.mxu0 %v645
    %1157 = vmatpush1.msra.mxu0 %v644
    %1158 = vmatprep.subr.mxu0 %v647
    %1159 = vmatpush1.msra.mxu0 %v646
    %1160 = vmatprep.subr.mxu0 %v649
    %1161 = vmatpush1.msra.mxu0 %v648
    %1162 = vmatprep.subr.mxu0 %v651
    %1163 = vmatpush1.msra.mxu0 %v650
    %1164 = vmatprep.subr.mxu0 %v653
    %1165 = vmatpush1.msra.mxu0 %v652
    %1166 = vmatprep.subr.mxu0 %v655
    %1167 = vmatpush1.msra.mxu0 %v654
    %1168 = vmatprep.subr.mxu0 %v657
    %1169 = vmatpush1.msra.mxu0 %v656
    %1170 = vmatprep.subr.mxu0 %v659
    %1171 = vmatpush1.msra.mxu0 %v658
    %1172 = vmatprep.subr.mxu0 %v661
    %1173 = vmatpush1.msra.mxu0 %v660
    %1174 = vmatprep.subr.mxu0 %v663
    %1175 = vmatpush1.msra.mxu0 %v662
    %1176 = vmatprep.subr.mxu0 %v665
    %1177 = vmatpush1.msra.mxu0 %v664
    %1178 = vmatprep.subr.mxu0 %v667
    %1179 = vmatpush1.msra.mxu0 %v666
    %1180 = vmatprep.subr.mxu0 %v669
    %1181 = vmatpush1.msra.mxu0 %v668
    %1182 = vmatprep.subr.mxu0 %v671
    %1183 = vmatpush1.msra.mxu0 %v670
    %1184 = vmatprep.subr.mxu0 %v673
    %1185 = vmatpush1.msra.mxu0 %v672
    %1186 = vmatprep.subr.mxu0 %v675
    %1187 = vmatpush1.msra.mxu0 %v674
    %1188 = vmatprep.subr.mxu0 %v677
    %1189 = vmatpush1.msra.mxu0 %v676
    %1190 = vmatprep.subr.mxu0 %v679
    %1191 = vmatpush1.msra.mxu0 %v678
    %1192 = vmatprep.subr.mxu0 %v681
    %1193 = vmatpush1.msra.mxu0 %v680
    %1194 = vmatprep.subr.mxu0 %v683
    %1195 = vmatpush1.msra.mxu0 %v682
    %1196 = vmatprep.subr.mxu0 %v685
    %1197 = vmatpush1.msra.mxu0 %v684
    %1198 = vmatprep.subr.mxu0 %v687
    %1199 = vmatpush1.msra.mxu0 %v686
    %1200 = vmatprep.subr.mxu0 %v689
    %1201 = vmatpush1.msra.mxu0 %v688
    %1202 = vmatprep.subr.mxu0 %v691
    %1203 = vmatpush1.msra.mxu0 %v690
    %1204 = vmatprep.mubr.f32.mxu0 %v693
    %1205 = vmatmul.mubr.f32.gmra.mrb[0].mxu0 %v692
    %v1206 = vpop.f32.mrb[0].mxu0
    %v1207 = vadd.f32 %v863, %v1206
    %v1208 = vpop.f32.mrb[0].mxu0
    %v1209 = vadd.f32 %v863, %v1208
    %1210 = vmatprep.mubr.f32.mxu0 %v695
    %1211 = vmatmul.mubr.f32.gmra.mrb[0].mxu0 %v694
    %v1212 = vpop.f32.mrb[0].mxu0
    %v1213 = vadd.f32 %v868, %v1212
    %v1214 = vpop.f32.mrb[0].mxu0
    %v1215 = vadd.f32 %v868, %v1214
    %1216 = vmatprep.mubr.f32.mxu0 %v697
    %1217 = vmatmul.mubr.f32.gmra.mrb[0].mxu0 %v696
    %v1218 = vpop.f32.mrb[0].mxu0
    %v1219 = vadd.f32 %v873, %v1218
    %v1220 = vpop.f32.mrb[0].mxu0
    %v1221 = vadd.f32 %v873, %v1220
    %1222 = vmatprep.mubr.f32.mxu0 %v699
    %1223 = vmatmul.mubr.f32.gmra.mrb[0].mxu0 %v698
    %v1224 = vpop.f32.mrb[0].mxu0
    %v1225 = vadd.f32 %v878, %v1224
    %v1226 = vpop.f32.mrb[0].mxu0
    %v1227 = vadd.f32 %v878, %v1226
    %1228 = vmatprep.mubr.f32.mxu0 %v701
    %1229 = vmatmul.mubr.f32.gmra.mrb[0].mxu0 %v700
    %v1230 = vpop.f32.mrb[0].mxu0
    %v1231 = vadd.f32 %v883, %v1230
    %v1232 = vpop.f32.mrb[0].mxu0
    %v1233 = vadd.f32 %v883, %v1232
    %1234 = vmatprep.mubr.f32.mxu0 %v703
    %1235 = vmatmul.mubr.f32.gmra.mrb[0].mxu0 %v702
    %v1236 = vpop.f32.mrb[0].mxu0
    %v1237 = vadd.f32 %v888, %v1236
    %v1238 = vpop.f32.mrb[0].mxu0
    %v1239 = vadd.f32 %v888, %v1238
    %1240 = vmatprep.mubr.f32.mxu0 %v705
    %1241 = vmatmul.mubr.f32.gmra.mrb[0].mxu0 %v704
    %v1242 = vpop.f32.mrb[0].mxu0
    %v1243 = vadd.f32 %v893, %v1242
    %v1244 = vpop.f32.mrb[0].mxu0
    %v1245 = vadd.f32 %v893, %v1244
    %1246 = vmatprep.mubr.f32.mxu0 %v707
    %1247 = vmatmul.mubr.f32.gmra.mrb[0].mxu0 %v706
    %v1248 = vpop.f32.mrb[0].mxu0
    %v1249 = vadd.f32 %v898, %v1248
    %v1250 = vpop.f32.mrb[0].mxu0
    %v1251 = vadd.f32 %v898, %v1250
    %1252 = vmatprep.mubr.f32.mxu0 %v709
    %1253 = vmatmul.mubr.f32.gmra.mrb[0].mxu0 %v708
    %v1254 = vpop.f32.mrb[0].mxu0
    %v1255 = vadd.f32 %v903, %v1254
    %v1256 = vpop.f32.mrb[0].mxu0
    %v1257 = vadd.f32 %v903, %v1256
    %1258 = vmatprep.mubr.f32.mxu0 %v711
    %1259 = vmatmul.mubr.f32.gmra.mrb[0].mxu0 %v710
    %v1260 = vpop.f32.mrb[0].mxu0
    %v1261 = vadd.f32 %v908, %v1260
    %v1262 = vpop.f32.mrb[0].mxu0
    %v1263 = vadd.f32 %v908, %v1262
    %1264 = vmatprep.mubr.f32.mxu0 %v713
    %1265 = vmatmul.mubr.f32.gmra.mrb[0].mxu0 %v712
    %v1266 = vpop.f32.mrb[0].mxu0
    %v1267 = vadd.f32 %v913, %v1266
    %v1268 = vpop.f32.mrb[0].mxu0
    %v1269 = vadd.f32 %v913, %v1268
    %1270 = vmatprep.mubr.f32.mxu0 %v715
    %1271 = vmatmul.mubr.f32.gmra.mrb[0].mxu0 %v714
    %v1272 = vpop.f32.mrb[0].mxu0
    %v1273 = vadd.f32 %v918, %v1272
    %v1274 = vpop.f32.mrb[0].mxu0
    %v1275 = vadd.f32 %v918, %v1274
    %1276 = vmatprep.mubr.f32.mxu0 %v717
    %1277 = vmatmul.mubr.f32.gmra.mrb[0].mxu0 %v716
    %v1278 = vpop.f32.mrb[0].mxu0
    %v1279 = vadd.f32 %v923, %v1278
    %v1280 = vpop.f32.mrb[0].mxu0
    %v1281 = vadd.f32 %v923, %v1280
    %1282 = vmatprep.mubr.f32.mxu0 %v719
    %1283 = vmatmul.mubr.f32.gmra.mrb[0].mxu0 %v718
    %v1284 = vpop.f32.mrb[0].mxu0
    %v1285 = vadd.f32 %v928, %v1284
    %v1286 = vpop.f32.mrb[0].mxu0
    %v1287 = vadd.f32 %v928, %v1286
    %1288 = vmatprep.mubr.f32.mxu0 %v721
    %1289 = vmatmul.mubr.f32.gmra.mrb[0].mxu0 %v720
    %v1290 = vpop.f32.mrb[0].mxu0
    %v1291 = vadd.f32 %v933, %v1290
    %v1292 = vpop.f32.mrb[0].mxu0
    %v1293 = vadd.f32 %v933, %v1292
    %1294 = vmatprep.mubr.f32.mxu0 %v723
    %1295 = vmatmul.mubr.f32.gmra.mrb[0].mxu0 %v722
    %v1296 = vpop.f32.mrb[0].mxu0
    %v1297 = vadd.f32 %v938, %v1296
    %v1298 = vpop.f32.mrb[0].mxu0
    %v1299 = vadd.f32 %v938, %v1298
    %1300 = vmatprep.mubr.f32.mxu0 %v725
    %1301 = vmatmul.mubr.f32.gmra.mrb[0].mxu0 %v724
    %v1302 = vpop.f32.mrb[0].mxu0
    %v1303 = vadd.f32 %v943, %v1302
    %v1304 = vpop.f32.mrb[0].mxu0
    %v1305 = vadd.f32 %v943, %v1304
    %1306 = vmatprep.mubr.f32.mxu0 %v727
    %1307 = vmatmul.mubr.f32.gmra.mrb[0].mxu0 %v726
    %v1308 = vpop.f32.mrb[0].mxu0
    %v1309 = vadd.f32 %v948, %v1308
    %v1310 = vpop.f32.mrb[0].mxu0
    %v1311 = vadd.f32 %v948, %v1310
    %1312 = vmatprep.mubr.f32.mxu0 %v729
    %1313 = vmatmul.mubr.f32.gmra.mrb[0].mxu0 %v728
    %v1314 = vpop.f32.mrb[0].mxu0
    %v1315 = vadd.f32 %v953, %v1314
    %v1316 = vpop.f32.mrb[0].mxu0
    %v1317 = vadd.f32 %v953, %v1316
    %1318 = vmatprep.mubr.f32.mxu0 %v731
    %1319 = vmatmul.mubr.f32.gmra.mrb[0].mxu0 %v730
    %v1320 = vpop.f32.mrb[0].mxu0
    %v1321 = vadd.f32 %v958, %v1320
    %v1322 = vpop.f32.mrb[0].mxu0
    %v1323 = vadd.f32 %v958, %v1322
    %1324 = vmatprep.mubr.f32.mxu0 %v733
    %1325 = vmatmul.mubr.f32.gmra.mrb[0].mxu0 %v732
    %v1326 = vpop.f32.mrb[0].mxu0
    %v1327 = vadd.f32 %v963, %v1326
    %v1328 = vpop.f32.mrb[0].mxu0
    %v1329 = vadd.f32 %v963, %v1328
    %1330 = vmatprep.mubr.f32.mxu0 %v735
    %1331 = vmatmul.mubr.f32.gmra.mrb[0].mxu0 %v734
    %v1332 = vpop.f32.mrb[0].mxu0
    %v1333 = vadd.f32 %v968, %v1332
    %v1334 = vpop.f32.mrb[0].mxu0
    %v1335 = vadd.f32 %v968, %v1334
    %1336 = vmatprep.mubr.f32.mxu0 %v737
    %1337 = vmatmul.mubr.f32.gmra.mrb[0].mxu0 %v736
    %v1338 = vpop.f32.mrb[0].mxu0
    %v1339 = vadd.f32 %v973, %v1338
    %v1340 = vpop.f32.mrb[0].mxu0
    %v1341 = vadd.f32 %v973, %v1340
    %1342 = vmatprep.mubr.f32.mxu0 %v739
    %1343 = vmatmul.mubr.f32.gmra.mrb[0].mxu0 %v738
    %v1344 = vpop.f32.mrb[0].mxu0
    %v1345 = vadd.f32 %v978, %v1344
    %v1346 = vpop.f32.mrb[0].mxu0
    %v1347 = vadd.f32 %v978, %v1346
    %1348 = vmatprep.mubr.f32.mxu0 %v741
    %1349 = vmatmul.mubr.f32.gmra.mrb[0].mxu0 %v740
    %v1350 = vpop.f32.mrb[0].mxu0
    %v1351 = vadd.f32 %v983, %v1350
    %v1352 = vpop.f32.mrb[0].mxu0
    %v1353 = vadd.f32 %v983, %v1352
    %1354 = vmatprep.mubr.f32.mxu0 %v743
    %1355 = vmatmul.mubr.f32.gmra.mrb[0].mxu0 %v742
    %v1356 = vpop.f32.mrb[0].mxu0
    %v1357 = vadd.f32 %v988, %v1356
    %v1358 = vpop.f32.mrb[0].mxu0
    %v1359 = vadd.f32 %v988, %v1358
    %1360 = vmatprep.mubr.f32.mxu0 %v745
    %1361 = vmatmul.mubr.f32.gmra.mrb[0].mxu0 %v744
    %v1362 = vpop.f32.mrb[0].mxu0
    %v1363 = vadd.f32 %v993, %v1362
    %v1364 = vpop.f32.mrb[0].mxu0
    %v1365 = vadd.f32 %v993, %v1364
    %1366 = vmatprep.mubr.f32.mxu0 %v747
    %1367 = vmatmul.mubr.f32.gmra.mrb[0].mxu0 %v746
    %v1368 = vpop.f32.mrb[0].mxu0
    %v1369 = vadd.f32 %v998, %v1368
    %v1370 = vpop.f32.mrb[0].mxu0
    %v1371 = vadd.f32 %v998, %v1370
    %1372 = vmatprep.mubr.f32.mxu0 %v749
    %1373 = vmatmul.mubr.f32.gmra.mrb[0].mxu0 %v748
    %v1374 = vpop.f32.mrb[0].mxu0
    %v1375 = vadd.f32 %v1003, %v1374
    %v1376 = vpop.f32.mrb[0].mxu0
    %v1377 = vadd.f32 %v1003, %v1376
    %1378 = vmatprep.mubr.f32.mxu0 %v751
    %1379 = vmatmul.mubr.f32.gmra.mrb[0].mxu0 %v750
    %v1380 = vpop.f32.mrb[0].mxu0
    %v1381 = vadd.f32 %v1008, %v1380
    %v1382 = vpop.f32.mrb[0].mxu0
    %v1383 = vadd.f32 %v1008, %v1382
    %1384 = vmatprep.mubr.f32.mxu0 %v753
    %1385 = vmatmul.mubr.f32.gmra.mrb[0].mxu0 %v752
    %v1386 = vpop.f32.mrb[0].mxu0
    %v1387 = vadd.f32 %v1013, %v1386
    %v1388 = vpop.f32.mrb[0].mxu0
    %v1389 = vadd.f32 %v1013, %v1388
    %1390 = vmatprep.mubr.f32.mxu0 %v755
    %1391 = vmatmul.mubr.f32.gmra.mrb[0].mxu0 %v754
    %v1392 = vpop.f32.mrb[0].mxu0
    %v1393 = vadd.f32 %v1018, %v1392
    %v1394 = vpop.f32.mrb[0].mxu0
    %v1395 = vadd.f32 %v1018, %v1394
    %1396 = vmatprep.mubr.f32.mxu0 %v757
    %1397 = vmatmul.mubr.f32.gmra.mrb[0].mxu0 %v756
    %v1398 = vpop.f32.mrb[0].mxu0
    %v1399 = vadd.f32 %v1023, %v1398
    %v1400 = vpop.f32.mrb[0].mxu0
    %v1401 = vadd.f32 %v1023, %v1400
    %1402 = vmatprep.mubr.f32.mxu0 %v759
    %1403 = vmatmul.mubr.f32.gmra.mrb[0].mxu0 %v758
    %v1404 = vpop.f32.mrb[0].mxu0
    %v1405 = vadd.f32 %v1028, %v1404
    %v1406 = vpop.f32.mrb[0].mxu0
    %v1407 = vadd.f32 %v1028, %v1406
    %1408 = vmatprep.mubr.f32.mxu0 %v761
    %1409 = vmatmul.mubr.f32.gmra.mrb[0].mxu0 %v760
    %v1410 = vpop.f32.mrb[0].mxu0
    %v1411 = vadd.f32 %v1033, %v1410
    %v1412 = vpop.f32.mrb[0].mxu0
    %v1413 = vadd.f32 %v1033, %v1412
    %1414 = vmatprep.mubr.f32.mxu0 %v763
    %1415 = vmatmul.mubr.f32.gmra.mrb[0].mxu0 %v762
    %v1416 = vpop.f32.mrb[0].mxu0
    %v1417 = vadd.f32 %v1038, %v1416
    %v1418 = vpop.f32.mrb[0].mxu0
    %v1419 = vadd.f32 %v1038, %v1418
    %1420 = vmatprep.mubr.f32.mxu0 %v765
    %1421 = vmatmul.mubr.f32.gmra.mrb[0].mxu0 %v764
    %v1422 = vpop.f32.mrb[0].mxu0
    %v1423 = vadd.f32 %v1043, %v1422
    %v1424 = vpop.f32.mrb[0].mxu0
    %v1425 = vadd.f32 %v1043, %v1424
    %1426 = vmatprep.mubr.f32.mxu0 %v767
    %1427 = vmatmul.mubr.f32.gmra.mrb[0].mxu0 %v766
    %v1428 = vpop.f32.mrb[0].mxu0
    %v1429 = vadd.f32 %v1048, %v1428
    %v1430 = vpop.f32.mrb[0].mxu0
    %v1431 = vadd.f32 %v1048, %v1430
    %1432 = vmatprep.mubr.f32.mxu0 %v769
    %1433 = vmatmul.mubr.f32.gmra.mrb[0].mxu0 %v768
    %v1434 = vpop.f32.mrb[0].mxu0
    %v1435 = vadd.f32 %v1053, %v1434
    %v1436 = vpop.f32.mrb[0].mxu0
    %v1437 = vadd.f32 %v1053, %v1436
    %1438 = vmatprep.mubr.f32.mxu0 %v771
    %1439 = vmatmul.mubr.f32.gmra.mrb[0].mxu0 %v770
    %v1440 = vpop.f32.mrb[0].mxu0
    %v1441 = vadd.f32 %v1058, %v1440
    %v1442 = vpop.f32.mrb[0].mxu0
    %v1443 = vadd.f32 %v1058, %v1442
    %1444 = vmatprep.mubr.f32.mxu0 %v773
    %1445 = vmatmul.mubr.f32.gmra.mrb[0].mxu0 %v772
    %v1446 = vpop.f32.mrb[0].mxu0
    %v1447 = vadd.f32 %v1063, %v1446
    %v1448 = vpop.f32.mrb[0].mxu0
    %v1449 = vadd.f32 %v1063, %v1448
    %1450 = vmatprep.mubr.f32.mxu0 %v775
    %1451 = vmatmul.mubr.f32.gmra.mrb[0].mxu0 %v774
    %v1452 = vpop.f32.mrb[0].mxu0
    %v1453 = vadd.f32 %v1068, %v1452
    %v1454 = vpop.f32.mrb[0].mxu0
    %v1455 = vadd.f32 %v1068, %v1454
    %1456 = vmatprep.mubr.f32.mxu0 %v777
    %1457 = vmatmul.mubr.f32.gmra.mrb[0].mxu0 %v776
    %v1458 = vpop.f32.mrb[0].mxu0
    %v1459 = vadd.f32 %v1073, %v1458
    %v1460 = vpop.f32.mrb[0].mxu0
    %v1461 = vadd.f32 %v1073, %v1460
    %1462 = vmatprep.mubr.f32.mxu0 %v779
    %1463 = vmatmul.mubr.f32.gmra.mrb[0].mxu0 %v778
    %v1464 = vpop.f32.mrb[0].mxu0
    %v1465 = vadd.f32 %v1078, %v1464
    %v1466 = vpop.f32.mrb[0].mxu0
    %v1467 = vadd.f32 %v1078, %v1466
    %1468 = vmatprep.mubr.f32.mxu0 %v781
    %1469 = vmatmul.mubr.f32.gmra.mrb[0].mxu0 %v780
    %v1470 = vpop.f32.mrb[0].mxu0
    %v1471 = vadd.f32 %v1083, %v1470
    %v1472 = vpop.f32.mrb[0].mxu0
    %v1473 = vadd.f32 %v1083, %v1472
    %1474 = vmatprep.mubr.f32.mxu0 %v783
    %1475 = vmatmul.mubr.f32.gmra.mrb[0].mxu0 %v782
    %v1476 = vpop.f32.mrb[0].mxu0
    %v1477 = vadd.f32 %v1088, %v1476
    %v1478 = vpop.f32.mrb[0].mxu0
    %v1479 = vadd.f32 %v1088, %v1478
    %1480 = vmatprep.mubr.f32.mxu0 %v785
    %1481 = vmatmul.mubr.f32.gmra.mrb[0].mxu0 %v784
    %v1482 = vpop.f32.mrb[0].mxu0
    %v1483 = vadd.f32 %v1093, %v1482
    %v1484 = vpop.f32.mrb[0].mxu0
    %v1485 = vadd.f32 %v1093, %v1484
    %1486 = vmatprep.mubr.f32.mxu0 %v787
    %1487 = vmatmul.mubr.f32.gmra.mrb[0].mxu0 %v786
    %v1488 = vpop.f32.mrb[0].mxu0
    %v1489 = vadd.f32 %v1098, %v1488
    %v1490 = vpop.f32.mrb[0].mxu0
    %v1491 = vadd.f32 %v1098, %v1490
    %1492 = vmatprep.mubr.f32.mxu0 %v789
    %1493 = vmatmul.mubr.f32.gmra.mrb[0].mxu0 %v788
    %v1494 = vpop.f32.mrb[0].mxu0
    %v1495 = vadd.f32 %v1103, %v1494
    %v1496 = vpop.f32.mrb[0].mxu0
    %v1497 = vadd.f32 %v1103, %v1496
    %1498 = vmatprep.mubr.f32.mxu0 %v791
    %1499 = vmatmul.mubr.f32.gmra.mrb[0].mxu0 %v790
    %v1500 = vpop.f32.mrb[0].mxu0
    %v1501 = vadd.f32 %v1108, %v1500
    %v1502 = vpop.f32.mrb[0].mxu0
    %v1503 = vadd.f32 %v1108, %v1502
    %1504 = vmatprep.mubr.f32.mxu0 %v793
    %1505 = vmatmul.mubr.f32.gmra.mrb[0].mxu0 %v792
    %v1506 = vpop.f32.mrb[0].mxu0
    %v1507 = vadd.f32 %v1113, %v1506
    %v1508 = vpop.f32.mrb[0].mxu0
    %v1509 = vadd.f32 %v1113, %v1508
    %1510 = vmatprep.mubr.f32.mxu0 %v795
    %1511 = vmatmul.mubr.f32.gmra.mrb[0].mxu0 %v794
    %v1512 = vpop.f32.mrb[0].mxu0
    %v1513 = vadd.f32 %v1118, %v1512
    %v1514 = vpop.f32.mrb[0].mxu0
    %v1515 = vadd.f32 %v1118, %v1514
    %1516 = vmatprep.mubr.f32.mxu0 %v797
    %1517 = vmatmul.mubr.f32.gmra.mrb[0].mxu0 %v796
    %v1518 = vpop.f32.mrb[0].mxu0
    %v1519 = vadd.f32 %v1123, %v1518
    %v1520 = vpop.f32.mrb[0].mxu0
    %v1521 = vadd.f32 %v1123, %v1520
    %1522 = vmatprep.mubr.f32.mxu0 %v799
    %1523 = vmatmul.mubr.f32.gmra.mrb[0].mxu0 %v798
    %v1524 = vpop.f32.mrb[0].mxu0
    %v1525 = vadd.f32 %v1128, %v1524
    %v1526 = vpop.f32.mrb[0].mxu0
    %v1527 = vadd.f32 %v1128, %v1526
    %1528 = vmatprep.mubr.f32.mxu0 %v801
    %1529 = vmatmul.mubr.f32.gmra.mrb[0].mxu0 %v800
    %v1530 = vpop.f32.mrb[0].mxu0
    %v1531 = vadd.f32 %v1133, %v1530
    %v1532 = vpop.f32.mrb[0].mxu0
    %v1533 = vadd.f32 %v1133, %v1532
    %1534 = vmatprep.mubr.f32.mxu0 %v803
    %1535 = vmatmul.mubr.f32.gmra.mrb[0].mxu0 %v802
    %v1536 = vpop.f32.mrb[0].mxu0
    %v1537 = vadd.f32 %v1138, %v1536
    %v1538 = vpop.f32.mrb[0].mxu0
    %v1539 = vadd.f32 %v1138, %v1538
    %1540 = vdwg.mxu0
    %v1541 = vmax.f32 %v1207, 0.0
    %v1542 = vmax.f32 %v1209, 0.0
    %v1543 = vmax.f32 %v1213, 0.0
    %v1544 = vmax.f32 %v1215, 0.0
    %v1545 = vmax.f32 %v1219, 0.0
    %v1546 = vmax.f32 %v1221, 0.0
    %v1547 = vmax.f32 %v1225, 0.0
    %v1548 = vmax.f32 %v1227, 0.0
    %v1549 = vmax.f32 %v1231, 0.0
    %v1550 = vmax.f32 %v1233, 0.0
    %v1551 = vmax.f32 %v1237, 0.0
    %v1552 = vmax.f32 %v1239, 0.0
    %v1553 = vmax.f32 %v1243, 0.0
    %v1554 = vmax.f32 %v1245, 0.0
    %v1555 = vmax.f32 %v1249, 0.0
    %v1556 = vmax.f32 %v1251, 0.0
    %v1557 = vmax.f32 %v1255, 0.0
    %v1558 = vmax.f32 %v1257, 0.0
    %v1559 = vmax.f32 %v1261, 0.0
    %v1560 = vmax.f32 %v1263, 0.0
    %v1561 = vmax.f32 %v1267, 0.0
    %v1562 = vmax.f32 %v1269, 0.0
    %v1563 = vmax.f32 %v1273, 0.0
    %v1564 = vmax.f32 %v1275, 0.0
    %v1565 = vmax.f32 %v1279, 0.0
    %v1566 = vmax.f32 %v1281, 0.0
    %v1567 = vmax.f32 %v1285, 0.0
    %v1568 = vmax.f32 %v1287, 0.0
    %v1569 = vmax.f32 %v1291, 0.0
    %v1570 = vmax.f32 %v1293, 0.0
    %v1571 = vmax.f32 %v1297, 0.0
    %v1572 = vmax.f32 %v1299, 0.0
    %v1573 = vmax.f32 %v1303, 0.0
    %v1574 = vmax.f32 %v1305, 0.0
    %v1575 = vmax.f32 %v1309, 0.0
    %v1576 = vmax.f32 %v1311, 0.0
    %v1577 = vmax.f32 %v1315, 0.0
    %v1578 = vmax.f32 %v1317, 0.0
    %v1579 = vmax.f32 %v1321, 0.0
    %v1580 = vmax.f32 %v1323, 0.0
    %v1581 = vmax.f32 %v1327, 0.0
    %v1582 = vmax.f32 %v1329, 0.0
    %v1583 = vmax.f32 %v1333, 0.0
    %v1584 = vmax.f32 %v1335, 0.0
    %v1585 = vmax.f32 %v1339, 0.0
    %v1586 = vmax.f32 %v1341, 0.0
    %v1587 = vmax.f32 %v1345, 0.0
    %v1588 = vmax.f32 %v1347, 0.0
    %v1589 = vmax.f32 %v1351, 0.0
    %v1590 = vmax.f32 %v1353, 0.0
    %v1591 = vmax.f32 %v1357, 0.0
    %v1592 = vmax.f32 %v1359, 0.0
    %v1593 = vmax.f32 %v1363, 0.0
    %v1594 = vmax.f32 %v1365, 0.0
    %v1595 = vmax.f32 %v1369, 0.0
    %v1596 = vmax.f32 %v1371, 0.0
    %v1597 = vmax.f32 %v1375, 0.0
    %v1598 = vmax.f32 %v1377, 0.0
    %v1599 = vmax.f32 %v1381, 0.0
    %v1600 = vmax.f32 %v1383, 0.0
    %v1601 = vmax.f32 %v1387, 0.0
    %v1602 = vmax.f32 %v1389, 0.0
    %v1603 = vmax.f32 %v1393, 0.0
    %v1604 = vmax.f32 %v1395, 0.0
    %v1605 = vmax.f32 %v1399, 0.0
    %v1606 = vmax.f32 %v1401, 0.0
    %v1607 = vmax.f32 %v1405, 0.0
    %v1608 = vmax.f32 %v1407, 0.0
    %v1609 = vmax.f32 %v1411, 0.0
    %v1610 = vmax.f32 %v1413, 0.0
    %v1611 = vmax.f32 %v1417, 0.0
    %v1612 = vmax.f32 %v1419, 0.0
    %v1613 = vmax.f32 %v1423, 0.0
    %v1614 = vmax.f32 %v1425, 0.0
    %v1615 = vmax.f32 %v1429, 0.0
    %v1616 = vmax.f32 %v1431, 0.0
    %v1617 = vmax.f32 %v1435, 0.0
    %v1618 = vmax.f32 %v1437, 0.0
    %v1619 = vmax.f32 %v1441, 0.0
    %v1620 = vmax.f32 %v1443, 0.0
    %v1621 = vmax.f32 %v1447, 0.0
    %v1622 = vmax.f32 %v1449, 0.0
    %v1623 = vmax.f32 %v1453, 0.0
    %v1624 = vmax.f32 %v1455, 0.0
    %v1625 = vmax.f32 %v1459, 0.0
    %v1626 = vmax.f32 %v1461, 0.0
    %v1627 = vmax.f32 %v1465, 0.0
    %v1628 = vmax.f32 %v1467, 0.0
    %v1629 = vmax.f32 %v1471, 0.0
    %v1630 = vmax.f32 %v1473, 0.0
    %v1631 = vmax.f32 %v1477, 0.0
    %v1632 = vmax.f32 %v1479, 0.0
    %v1633 = vmax.f32 %v1483, 0.0
    %v1634 = vmax.f32 %v1485, 0.0
    %v1635 = vmax.f32 %v1489, 0.0
    %v1636 = vmax.f32 %v1491, 0.0
    %v1637 = vmax.f32 %v1495, 0.0
    %v1638 = vmax.f32 %v1497, 0.0
    %v1639 = vmax.f32 %v1501, 0.0
    %v1640 = vmax.f32 %v1503, 0.0
    %v1641 = vmax.f32 %v1507, 0.0
    %v1642 = vmax.f32 %v1509, 0.0
    %v1643 = vmax.f32 %v1513, 0.0
    %v1644 = vmax.f32 %v1515, 0.0
    %v1645 = vmax.f32 %v1519, 0.0
    %v1646 = vmax.f32 %v1521, 0.0
    %v1647 = vmax.f32 %v1525, 0.0
    %v1648 = vmax.f32 %v1527, 0.0
    %v1649 = vmax.f32 %v1531, 0.0
    %v1650 = vmax.f32 %v1533, 0.0
    %v1651 = vmax.f32 %v1537, 0.0
    %v1652 = vmax.f32 %v1539, 0.0
    %v1653 = vmax.f32 %v1541, %v1597
    %v1654 = vmax.f32 %v1542, %v1598
    %v1655 = vmax.f32 %v1543, %v1599
    %v1656 = vmax.f32 %v1544, %v1600
    %v1657 = vmax.f32 %v1545, %v1601
    %v1658 = vmax.f32 %v1546, %v1602
    %v1659 = vmax.f32 %v1547, %v1603
    %v1660 = vmax.f32 %v1548, %v1604
    %v1661 = vmax.f32 %v1549, %v1605
    %v1662 = vmax.f32 %v1550, %v1606
    %v1663 = vmax.f32 %v1551, %v1607
    %v1664 = vmax.f32 %v1552, %v1608
    %v1665 = vmax.f32 %v1553, %v1609
    %v1666 = vmax.f32 %v1554, %v1610
    %v1667 = vmax.f32 %v1555, %v1611
    %v1668 = vmax.f32 %v1556, %v1612
    %v1669 = vmax.f32 %v1557, %v1613
    %v1670 = vmax.f32 %v1558, %v1614
    %v1671 = vmax.f32 %v1559, %v1615
    %v1672 = vmax.f32 %v1560, %v1616
    %v1673 = vmax.f32 %v1561, %v1617
    %v1674 = vmax.f32 %v1562, %v1618
    %v1675 = vmax.f32 %v1563, %v1619
    %v1676 = vmax.f32 %v1564, %v1620
    %v1677 = vmax.f32 %v1565, %v1621
    %v1678 = vmax.f32 %v1566, %v1622
    %v1679 = vmax.f32 %v1567, %v1623
    %v1680 = vmax.f32 %v1568, %v1624
    %v1681 = vmax.f32 %v1569, %v1625
    %v1682 = vmax.f32 %v1570, %v1626
    %v1683 = vmax.f32 %v1571, %v1627
    %v1684 = vmax.f32 %v1572, %v1628
    %v1685 = vmax.f32 %v1573, %v1629
    %v1686 = vmax.f32 %v1574, %v1630
    %v1687 = vmax.f32 %v1575, %v1631
    %v1688 = vmax.f32 %v1576, %v1632
    %v1689 = vmax.f32 %v1577, %v1633
    %v1690 = vmax.f32 %v1578, %v1634
    %v1691 = vmax.f32 %v1579, %v1635
    %v1692 = vmax.f32 %v1580, %v1636
    %v1693 = vmax.f32 %v1581, %v1637
    %v1694 = vmax.f32 %v1582, %v1638
    %v1695 = vmax.f32 %v1583, %v1639
    %v1696 = vmax.f32 %v1584, %v1640
    %v1697 = vmax.f32 %v1585, %v1641
    %v1698 = vmax.f32 %v1586, %v1642
    %v1699 = vmax.f32 %v1587, %v1643
    %v1700 = vmax.f32 %v1588, %v1644
    %v1701 = vmax.f32 %v1589, %v1645
    %v1702 = vmax.f32 %v1590, %v1646
    %v1703 = vmax.f32 %v1591, %v1647
    %v1704 = vmax.f32 %v1592, %v1648
    %v1705 = vmax.f32 %v1593, %v1649
    %v1706 = vmax.f32 %v1594, %v1650
    %v1707 = vmax.f32 %v1595, %v1651
    %v1708 = vmax.f32 %v1596, %v1652
    %v1709 = vld [vmem:[%s5] sm:$0xff]
    %v1710 = vld [vmem:[%s5 + $0x8] sm:$0xff]
    %v1711 = vld [vmem:[%s5 + $0x10] sm:$0xff]
    %v1712 = vld [vmem:[%s5 + $0x18] sm:$0xff]
    %v1713 = vld [vmem:[%s5 + $0x20] sm:$0xff]
    %v1714 = vld [vmem:[%s5 + $0x28] sm:$0xff]
    %v1715 = vld [vmem:[%s5 + $0x30] sm:$0xff]
    %v1716 = vld [vmem:[%s5 + $0x38] sm:$0xff]
    %v1717 = vld [vmem:[%s5 + $0x40] sm:$0xff]
    %v1718 = vld [vmem:[%s5 + $0x48] sm:$0xff]
    %v1719 = vld [vmem:[%s5 + $0x50] sm:$0xff]
    %v1720 = vld [vmem:[%s5 + $0x58] sm:$0xff]
    %v1721 = vld [vmem:[%s5 + $0x60] sm:$0xff]
    %v1722 = vld [vmem:[%s5 + $0x68] sm:$0xff]
    %v1723 = vld [vmem:[%s5 + $0x70] sm:$0xff]
    %v1724 = vld [vmem:[%s5 + $0x78] sm:$0xff]
    %v1725 = vld [vmem:[%s5 + $0x80] sm:$0xff]
    %v1726 = vld [vmem:[%s5 + $0x88] sm:$0xff]
    %v1727 = vld [vmem:[%s5 + $0x90] sm:$0xff]
    %v1728 = vld [vmem:[%s5 + $0x98] sm:$0xff]
    %v1729 = vld [vmem:[%s5 + $0xa0] sm:$0xff]
    %v1730 = vld [vmem:[%s5 + $0xa8] sm:$0xff]
    %v1731 = vld [vmem:[%s5 + $0xb0] sm:$0xff]
    %v1732 = vld [vmem:[%s5 + $0xb8] sm:$0xff]
    %v1733 = vld [vmem:[%s5 + $0xc0] sm:$0xff]
    %v1734 = vld [vmem:[%s5 + $0xc8] sm:$0xff]
    %v1735 = vld [vmem:[%s5 + $0xd0] sm:$0xff]
    %v1736 = vld [vmem:[%s5 + $0xd8] sm:$0xff]
    %v1737 = vld [vmem:[%s5 + $0xe0] sm:$0xff]
    %v1738 = vld [vmem:[%s5 + $0xe8] sm:$0xff]
    %v1739 = vld [vmem:[%s5 + $0xf0] sm:$0xff]
    %v1740 = vld [vmem:[%s5 + $0xf8] sm:$0xff]
    %v1741 = vld [vmem:[%s5 + $0x100] sm:$0xff]
    %v1742 = vld [vmem:[%s5 + $0x108] sm:$0xff]
    %v1743 = vld [vmem:[%s5 + $0x110] sm:$0xff]
    %v1744 = vld [vmem:[%s5 + $0x118] sm:$0xff]
    %v1745 = vld [vmem:[%s5 + $0x120] sm:$0xff]
    %v1746 = vld [vmem:[%s5 + $0x128] sm:$0xff]
    %v1747 = vld [vmem:[%s5 + $0x130] sm:$0xff]
    %v1748 = vld [vmem:[%s5 + $0x138] sm:$0xff]
    %v1749 = vld [vmem:[%s5 + $0x140] sm:$0xff]
    %v1750 = vld [vmem:[%s5 + $0x148] sm:$0xff]
    %v1751 = vld [vmem:[%s5 + $0x150] sm:$0xff]
    %v1752 = vld [vmem:[%s5 + $0x158] sm:$0xff]
    %v1753 = vld [vmem:[%s5 + $0x160] sm:$0xff]
    %v1754 = vld [vmem:[%s5 + $0x168] sm:$0xff]
    %v1755 = vld [vmem:[%s5 + $0x170] sm:$0xff]
    %v1756 = vld [vmem:[%s5 + $0x178] sm:$0xff]
    %v1757 = vld [vmem:[%s5 + $0x180] sm:$0xff]
    %v1758 = vld [vmem:[%s5 + $0x188] sm:$0xff]
    %v1759 = vld [vmem:[%s5 + $0x190] sm:$0xff]
    %v1760 = vld [vmem:[%s5 + $0x198] sm:$0xff]
    %v1761 = vld [vmem:[%s5 + $0x1a0] sm:$0xff]
    %v1762 = vld [vmem:[%s5 + $0x1a8] sm:$0xff]
    %v1763 = vld [vmem:[%s5 + $0x1b0] sm:$0xff]
    %v1764 = vld [vmem:[%s5 + $0x1b8] sm:$0xff]
    %v1765 = vld [vmem:[%s5 + $0x1c0] sm:$0xff]
    %v1766 = vld [vmem:[%s5 + $0x1c8] sm:$0xff]
    %v1767 = vld [vmem:[%s5 + $0x1d0] sm:$0xff]
    %v1768 = vld [vmem:[%s5 + $0x1d8] sm:$0xff]
    %v1769 = vld [vmem:[%s5 + $0x1e0] sm:$0xff]
    %v1770 = vld [vmem:[%s5 + $0x1e8] sm:$0xff]
    %v1771 = vld [vmem:[%s5 + $0x1f0] sm:$0xff]
    %v1772 = vld [vmem:[%s5 + $0x1f8] sm:$0xff]
    %v1773 = vld [vmem:[%s6] sm:$0xff]
    %v1774 = vld [vmem:[%s6 + $0x8] sm:$0xff]
    %v1775 = vld [vmem:[%s6 + $0x10] sm:$0xff]
    %v1776 = vld [vmem:[%s6 + $0x18] sm:$0xff]
    %v1777 = vld [vmem:[%s6 + $0x20] sm:$0xff]
    %v1778 = vld [vmem:[%s6 + $0x28] sm:$0xff]
    %v1779 = vld [vmem:[%s6 + $0x30] sm:$0xff]
    %v1780 = vld [vmem:[%s6 + $0x38] sm:$0xff]
    %v1781 = vld [vmem:[%s6 + $0x40] sm:$0xff]
    %v1782 = vld [vmem:[%s6 + $0x48] sm:$0xff]
    %v1783 = vld [vmem:[%s6 + $0x50] sm:$0xff]
    %v1784 = vld [vmem:[%s6 + $0x58] sm:$0xff]
    %v1785 = vld [vmem:[%s6 + $0x60] sm:$0xff]
    %v1786 = vld [vmem:[%s6 + $0x68] sm:$0xff]
    %v1787 = vld [vmem:[%s6 + $0x70] sm:$0xff]
    %v1788 = vld [vmem:[%s6 + $0x78] sm:$0xff]
    %v1789 = vld [vmem:[%s6 + $0x80] sm:$0xff]
    %v1790 = vld [vmem:[%s6 + $0x88] sm:$0xff]
    %v1791 = vld [vmem:[%s6 + $0x90] sm:$0xff]
    %v1792 = vld [vmem:[%s6 + $0x98] sm:$0xff]
    %v1793 = vld [vmem:[%s6 + $0xa0] sm:$0xff]
    %v1794 = vld [vmem:[%s6 + $0xa8] sm:$0xff]
    %v1795 = vld [vmem:[%s6 + $0xb0] sm:$0xff]
    %v1796 = vld [vmem:[%s6 + $0xb8] sm:$0xff]
    %v1797 = vld [vmem:[%s6 + $0xc0] sm:$0xff]
    %v1798 = vld [vmem:[%s6 + $0xc8] sm:$0xff]
    %v1799 = vld [vmem:[%s6 + $0xd0] sm:$0xff]
    %v1800 = vld [vmem:[%s6 + $0xd8] sm:$0xff]
    %v1801 = vld [vmem:[%s6 + $0xe0] sm:$0xff]
    %v1802 = vld [vmem:[%s6 + $0xe8] sm:$0xff]
    %v1803 = vld [vmem:[%s6 + $0xf0] sm:$0xff]
    %v1804 = vld [vmem:[%s6 + $0xf8] sm:$0xff]
    %1806 = vset.pattern.permute.xlu0 0
    %1807 = vperm.xlu0 %1806, %v1773
    %v1808 = vpop.permute.xlu0 %1807
    %1811 = vset.pattern.permute.xlu0 0
    %1812 = vperm.xlu0 %1811, %v1774
    %v1813 = vpop.permute.xlu0 %1812
    %1816 = vset.pattern.permute.xlu0 0
    %1817 = vperm.xlu0 %1816, %v1775
    %v1818 = vpop.permute.xlu0 %1817
    %1821 = vset.pattern.permute.xlu0 0
    %1822 = vperm.xlu0 %1821, %v1776
    %v1823 = vpop.permute.xlu0 %1822
    %1826 = vset.pattern.permute.xlu0 0
    %1827 = vperm.xlu0 %1826, %v1777
    %v1828 = vpop.permute.xlu0 %1827
    %1831 = vset.pattern.permute.xlu0 0
    %1832 = vperm.xlu0 %1831, %v1778
    %v1833 = vpop.permute.xlu0 %1832
    %1836 = vset.pattern.permute.xlu0 0
    %1837 = vperm.xlu0 %1836, %v1779
    %v1838 = vpop.permute.xlu0 %1837
    %1841 = vset.pattern.permute.xlu0 0
    %1842 = vperm.xlu0 %1841, %v1780
    %v1843 = vpop.permute.xlu0 %1842
    %1846 = vset.pattern.permute.xlu0 0
    %1847 = vperm.xlu0 %1846, %v1781
    %v1848 = vpop.permute.xlu0 %1847
    %1851 = vset.pattern.permute.xlu0 0
    %1852 = vperm.xlu0 %1851, %v1782
    %v1853 = vpop.permute.xlu0 %1852
    %1856 = vset.pattern.permute.xlu0 0
    %1857 = vperm.xlu0 %1856, %v1783
    %v1858 = vpop.permute.xlu0 %1857
    %1861 = vset.pattern.permute.xlu0 0
    %1862 = vperm.xlu0 %1861, %v1784
    %v1863 = vpop.permute.xlu0 %1862
    %1866 = vset.pattern.permute.xlu0 0
    %1867 = vperm.xlu0 %1866, %v1785
    %v1868 = vpop.permute.xlu0 %1867
    %1871 = vset.pattern.permute.xlu0 0
    %1872 = vperm.xlu0 %1871, %v1786
    %v1873 = vpop.permute.xlu0 %1872
    %1876 = vset.pattern.permute.xlu0 0
    %1877 = vperm.xlu0 %1876, %v1787
    %v1878 = vpop.permute.xlu0 %1877
    %1881 = vset.pattern.permute.xlu0 0
    %1882 = vperm.xlu0 %1881, %v1788
    %v1883 = vpop.permute.xlu0 %1882
    %1886 = vset.pattern.permute.xlu0 0
    %1887 = vperm.xlu0 %1886, %v1789
    %v1888 = vpop.permute.xlu0 %1887
    %1891 = vset.pattern.permute.xlu0 0
    %1892 = vperm.xlu0 %1891, %v1790
    %v1893 = vpop.permute.xlu0 %1892
    %1896 = vset.pattern.permute.xlu0 0
    %1897 = vperm.xlu0 %1896, %v1791
    %v1898 = vpop.permute.xlu0 %1897
    %1901 = vset.pattern.permute.xlu0 0
    %1902 = vperm.xlu0 %1901, %v1792
    %v1903 = vpop.permute.xlu0 %1902
    %1906 = vset.pattern.permute.xlu0 0
    %1907 = vperm.xlu0 %1906, %v1793
    %v1908 = vpop.permute.xlu0 %1907
    %1911 = vset.pattern.permute.xlu0 0
    %1912 = vperm.xlu0 %1911, %v1794
    %v1913 = vpop.permute.xlu0 %1912
    %1916 = vset.pattern.permute.xlu0 0
    %1917 = vperm.xlu0 %1916, %v1795
    %v1918 = vpop.permute.xlu0 %1917
    %1921 = vset.pattern.permute.xlu0 0
    %1922 = vperm.xlu0 %1921, %v1796
    %v1923 = vpop.permute.xlu0 %1922
    %1926 = vset.pattern.permute.xlu0 0
    %1927 = vperm.xlu0 %1926, %v1797
    %v1928 = vpop.permute.xlu0 %1927
    %1931 = vset.pattern.permute.xlu0 0
    %1932 = vperm.xlu0 %1931, %v1798
    %v1933 = vpop.permute.xlu0 %1932
    %1936 = vset.pattern.permute.xlu0 0
    %1937 = vperm.xlu0 %1936, %v1799
    %v1938 = vpop.permute.xlu0 %1937
    %1941 = vset.pattern.permute.xlu0 0
    %1942 = vperm.xlu0 %1941, %v1800
    %v1943 = vpop.permute.xlu0 %1942
    %1946 = vset.pattern.permute.xlu0 0
    %1947 = vperm.xlu0 %1946, %v1801
    %v1948 = vpop.permute.xlu0 %1947
    %1951 = vset.pattern.permute.xlu0 0
    %1952 = vperm.xlu0 %1951, %v1802
    %v1953 = vpop.permute.xlu0 %1952
    %1956 = vset.pattern.permute.xlu0 0
    %1957 = vperm.xlu0 %1956, %v1803
    %v1958 = vpop.permute.xlu0 %1957
    %1961 = vset.pattern.permute.xlu0 0
    %1962 = vperm.xlu0 %1961, %v1804
    %v1963 = vpop.permute.xlu0 %1962
    %vm1965 = vcmask 785408
    %v1967 = vsel %vm1965, %v1710, 0
    %v1970 = vsel %vm1965, %v1712, 0
    %v1973 = vsel %vm1965, %v1714, 0
    %v1976 = vsel %vm1965, %v1716, 0
    %v1979 = vsel %vm1965, %v1718, 0
    %v1982 = vsel %vm1965, %v1720, 0
    %v1985 = vsel %vm1965, %v1722, 0
    %v1988 = vsel %vm1965, %v1724, 0
    %v1991 = vsel %vm1965, %v1726, 0
    %v1994 = vsel %vm1965, %v1728, 0
    %v1997 = vsel %vm1965, %v1730, 0
    %v2000 = vsel %vm1965, %v1732, 0
    %v2003 = vsel %vm1965, %v1734, 0
    %v2006 = vsel %vm1965, %v1736, 0
    %v2009 = vsel %vm1965, %v1738, 0
    %v2012 = vsel %vm1965, %v1740, 0
    %v2015 = vsel %vm1965, %v1742, 0
    %v2018 = vsel %vm1965, %v1744, 0
    %v2021 = vsel %vm1965, %v1746, 0
    %v2024 = vsel %vm1965, %v1748, 0
    %v2027 = vsel %vm1965, %v1750, 0
    %v2030 = vsel %vm1965, %v1752, 0
    %v2033 = vsel %vm1965, %v1754, 0
    %v2036 = vsel %vm1965, %v1756, 0
    %v2039 = vsel %vm1965, %v1758, 0
    %v2042 = vsel %vm1965, %v1760, 0
    %v2045 = vsel %vm1965, %v1762, 0
    %v2048 = vsel %vm1965, %v1764, 0
    %v2051 = vsel %vm1965, %v1766, 0
    %v2054 = vsel %vm1965, %v1768, 0
    %v2057 = vsel %vm1965, %v1770, 0
    %v2060 = vsel %vm1965, %v1772, 0
    %2062 = vmatprep.subr.mxu0 %v1654
    %2063 = vmatpush1.msra.mxu0 %v1653
    %2064 = vmatprep.subr.mxu0 %v1656
    %2065 = vmatpush1.msra.mxu0 %v1655
    %2066 = vmatprep.subr.mxu0 %v1658
    %2067 = vmatpush1.msra.mxu0 %v1657
    %2068 = vmatprep.subr.mxu0 %v1660
    %2069 = vmatpush1.msra.mxu0 %v1659
    %2070 = vmatprep.subr.mxu0 %v1662
    %2071 = vmatpush1.msra.mxu0 %v1661
    %2072 = vmatprep.subr.mxu0 %v1664
    %2073 = vmatpush1.msra.mxu0 %v1663
    %2074 = vmatprep.subr.mxu0 %v1666
    %2075 = vmatpush1.msra.mxu0 %v1665
    %2076 = vmatprep.subr.mxu0 %v1668
    %2077 = vmatpush1.msra.mxu0 %v1667
    %2078 = vmatprep.subr.mxu0 %v1670
    %2079 = vmatpush1.msra.mxu0 %v1669
    %2080 = vmatprep.subr.mxu0 %v1672
    %2081 = vmatpush1.msra.mxu0 %v1671
    %2082 = vmatprep.subr.mxu0 %v1674
    %2083 = vmatpush1.msra.mxu0 %v1673
    %2084 = vmatprep.subr.mxu0 %v1676
    %2085 = vmatpush1.msra.mxu0 %v1675
    %2086 = vmatprep.subr.mxu0 %v1678
    %2087 = vmatpush1.msra.mxu0 %v1677
    %2088 = vmatprep.subr.mxu0 %v1680
    %2089 = vmatpush1.msra.mxu0 %v1679
    %2090 = vmatprep.subr.mxu0 %v1682
    %2091 = vmatpush1.msra.mxu0 %v1681
    %2092 = vmatprep.subr.mxu0 %v1684
    %2093 = vmatpush1.msra.mxu0 %v1683
    %2094 = vmatprep.subr.mxu0 %v1686
    %2095 = vmatpush1.msra.mxu0 %v1685
    %2096 = vmatprep.subr.mxu0 %v1688
    %2097 = vmatpush1.msra.mxu0 %v1687
    %2098 = vmatprep.subr.mxu0 %v1690
    %2099 = vmatpush1.msra.mxu0 %v1689
    %2100 = vmatprep.subr.mxu0 %v1692
    %2101 = vmatpush1.msra.mxu0 %v1691
    %2102 = vmatprep.subr.mxu0 %v1694
    %2103 = vmatpush1.msra.mxu0 %v1693
    %2104 = vmatprep.subr.mxu0 %v1696
    %2105 = vmatpush1.msra.mxu0 %v1695
    %2106 = vmatprep.subr.mxu0 %v1698
    %2107 = vmatpush1.msra.mxu0 %v1697
    %2108 = vmatprep.subr.mxu0 %v1700
    %2109 = vmatpush1.msra.mxu0 %v1699
    %2110 = vmatprep.subr.mxu0 %v1702
    %2111 = vmatpush1.msra.mxu0 %v1701
    %2112 = vmatprep.subr.mxu0 %v1704
    %2113 = vmatpush1.msra.mxu0 %v1703
    %2114 = vmatprep.subr.mxu0 %v1706
    %2115 = vmatpush1.msra.mxu0 %v1705
    %2116 = vmatprep.subr.mxu0 %v1708
    %2117 = vmatpush1.msra.mxu0 %v1707
    %2118 = vmatprep.subr.mxu0 0.0
    %2119 = vmatpush1.msra.mxu0 0.0
    %2120 = vmatprep.subr.mxu0 0.0
    %2121 = vmatpush1.msra.mxu0 0.0
    %2122 = vmatprep.subr.mxu0 0.0
    %2123 = vmatpush1.msra.mxu0 0.0
    %2124 = vmatprep.subr.mxu0 0.0
    %2125 = vmatpush1.msra.mxu0 0.0
    %2126 = vmatprep.mubr.f32.mxu0 %v1967
    %2127 = vmatmul.mubr.f32.gmra.mrb[0].mxu0 %v1709
    %v2128 = vpop.f32.mrb[0].mxu0
    %v2129 = vadd.f32 %v1808, %v2128
    %v2130 = vpop.f32.mrb[0].mxu0
    %v2131 = vadd.f32 %v1808, %v2130
    %2132 = vmatprep.mubr.f32.mxu0 %v1970
    %2133 = vmatmul.mubr.f32.gmra.mrb[0].mxu0 %v1711
    %v2134 = vpop.f32.mrb[0].mxu0
    %v2135 = vadd.f32 %v1813, %v2134
    %v2136 = vpop.f32.mrb[0].mxu0
    %v2137 = vadd.f32 %v1813, %v2136
    %2138 = vmatprep.mubr.f32.mxu0 %v1973
    %2139 = vmatmul.mubr.f32.gmra.mrb[0].mxu0 %v1713
    %v2140 = vpop.f32.mrb[0].mxu0
    %v2141 = vadd.f32 %v1818, %v2140
    %v2142 = vpop.f32.mrb[0].mxu0
    %v2143 = vadd.f32 %v1818, %v2142
    %2144 = vmatprep.mubr.f32.mxu0 %v1976
    %2145 = vmatmul.mubr.f32.gmra.mrb[0].mxu0 %v1715
    %v2146 = vpop.f32.mrb[0].mxu0
    %v2147 = vadd.f32 %v1823, %v2146
    %v2148 = vpop.f32.mrb[0].mxu0
    %v2149 = vadd.f32 %v1823, %v2148
    %2150 = vmatprep.mubr.f32.mxu0 %v1979
    %2151 = vmatmul.mubr.f32.gmra.mrb[0].mxu0 %v1717
    %v2152 = vpop.f32.mrb[0].mxu0
    %v2153 = vadd.f32 %v1828, %v2152
    %v2154 = vpop.f32.mrb[0].mxu0
    %v2155 = vadd.f32 %v1828, %v2154
    %2156 = vmatprep.mubr.f32.mxu0 %v1982
    %2157 = vmatmul.mubr.f32.gmra.mrb[0].mxu0 %v1719
    %v2158 = vpop.f32.mrb[0].mxu0
    %v2159 = vadd.f32 %v1833, %v2158
    %v2160 = vpop.f32.mrb[0].mxu0
    %v2161 = vadd.f32 %v1833, %v2160
    %2162 = vmatprep.mubr.f32.mxu0 %v1985
    %2163 = vmatmul.mubr.f32.gmra.mrb[0].mxu0 %v1721
    %v2164 = vpop.f32.mrb[0].mxu0
    %v2165 = vadd.f32 %v1838, %v2164
    %v2166 = vpop.f32.mrb[0].mxu0
    %v2167 = vadd.f32 %v1838, %v2166
    %2168 = vmatprep.mubr.f32.mxu0 %v1988
    %2169 = vmatmul.mubr.f32.gmra.mrb[0].mxu0 %v1723
    %v2170 = vpop.f32.mrb[0].mxu0
    %v2171 = vadd.f32 %v1843, %v2170
    %v2172 = vpop.f32.mrb[0].mxu0
    %v2173 = vadd.f32 %v1843, %v2172
    %2174 = vmatprep.mubr.f32.mxu0 %v1991
    %2175 = vmatmul.mubr.f32.gmra.mrb[0].mxu0 %v1725
    %v2176 = vpop.f32.mrb[0].mxu0
    %v2177 = vadd.f32 %v1848, %v2176
    %v2178 = vpop.f32.mrb[0].mxu0
    %v2179 = vadd.f32 %v1848, %v2178
    %2180 = vmatprep.mubr.f32.mxu0 %v1994
    %2181 = vmatmul.mubr.f32.gmra.mrb[0].mxu0 %v1727
    %v2182 = vpop.f32.mrb[0].mxu0
    %v2183 = vadd.f32 %v1853, %v2182
    %v2184 = vpop.f32.mrb[0].mxu0
    %v2185 = vadd.f32 %v1853, %v2184
    %2186 = vmatprep.mubr.f32.mxu0 %v1997
    %2187 = vmatmul.mubr.f32.gmra.mrb[0].mxu0 %v1729
    %v2188 = vpop.f32.mrb[0].mxu0
    %v2189 = vadd.f32 %v1858, %v2188
    %v2190 = vpop.f32.mrb[0].mxu0
    %v2191 = vadd.f32 %v1858, %v2190
    %2192 = vmatprep.mubr.f32.mxu0 %v2000
    %2193 = vmatmul.mubr.f32.gmra.mrb[0].mxu0 %v1731
    %v2194 = vpop.f32.mrb[0].mxu0
    %v2195 = vadd.f32 %v1863, %v2194
    %v2196 = vpop.f32.mrb[0].mxu0
    %v2197 = vadd.f32 %v1863, %v2196
    %2198 = vmatprep.mubr.f32.mxu0 %v2003
    %2199 = vmatmul.mubr.f32.gmra.mrb[0].mxu0 %v1733
    %v2200 = vpop.f32.mrb[0].mxu0
    %v2201 = vadd.f32 %v1868, %v2200
    %v2202 = vpop.f32.mrb[0].mxu0
    %v2203 = vadd.f32 %v1868, %v2202
    %2204 = vmatprep.mubr.f32.mxu0 %v2006
    %2205 = vmatmul.mubr.f32.gmra.mrb[0].mxu0 %v1735
    %v2206 = vpop.f32.mrb[0].mxu0
    %v2207 = vadd.f32 %v1873, %v2206
    %v2208 = vpop.f32.mrb[0].mxu0
    %v2209 = vadd.f32 %v1873, %v2208
    %2210 = vmatprep.mubr.f32.mxu0 %v2009
    %2211 = vmatmul.mubr.f32.gmra.mrb[0].mxu0 %v1737
    %v2212 = vpop.f32.mrb[0].mxu0
    %v2213 = vadd.f32 %v1878, %v2212
    %v2214 = vpop.f32.mrb[0].mxu0
    %v2215 = vadd.f32 %v1878, %v2214
    %2216 = vmatprep.mubr.f32.mxu0 %v2012
    %2217 = vmatmul.mubr.f32.gmra.mrb[0].mxu0 %v1739
    %v2218 = vpop.f32.mrb[0].mxu0
    %v2219 = vadd.f32 %v1883, %v2218
    %v2220 = vpop.f32.mrb[0].mxu0
    %v2221 = vadd.f32 %v1883, %v2220
    %2222 = vmatprep.mubr.f32.mxu0 %v2015
    %2223 = vmatmul.mubr.f32.gmra.mrb[0].mxu0 %v1741
    %v2224 = vpop.f32.mrb[0].mxu0
    %v2225 = vadd.f32 %v1888, %v2224
    %v2226 = vpop.f32.mrb[0].mxu0
    %v2227 = vadd.f32 %v1888, %v2226
    %2228 = vmatprep.mubr.f32.mxu0 %v2018
    %2229 = vmatmul.mubr.f32.gmra.mrb[0].mxu0 %v1743
    %v2230 = vpop.f32.mrb[0].mxu0
    %v2231 = vadd.f32 %v1893, %v2230
    %v2232 = vpop.f32.mrb[0].mxu0
    %v2233 = vadd.f32 %v1893, %v2232
    %2234 = vmatprep.mubr.f32.mxu0 %v2021
    %2235 = vmatmul.mubr.f32.gmra.mrb[0].mxu0 %v1745
    %v2236 = vpop.f32.mrb[0].mxu0
    %v2237 = vadd.f32 %v1898, %v2236
    %v2238 = vpop.f32.mrb[0].mxu0
    %v2239 = vadd.f32 %v1898, %v2238
    %2240 = vmatprep.mubr.f32.mxu0 %v2024
    %2241 = vmatmul.mubr.f32.gmra.mrb[0].mxu0 %v1747
    %v2242 = vpop.f32.mrb[0].mxu0
    %v2243 = vadd.f32 %v1903, %v2242
    %v2244 = vpop.f32.mrb[0].mxu0
    %v2245 = vadd.f32 %v1903, %v2244
    %2246 = vmatprep.mubr.f32.mxu0 %v2027
    %2247 = vmatmul.mubr.f32.gmra.mrb[0].mxu0 %v1749
    %v2248 = vpop.f32.mrb[0].mxu0
    %v2249 = vadd.f32 %v1908, %v2248
    %v2250 = vpop.f32.mrb[0].mxu0
    %v2251 = vadd.f32 %v1908, %v2250
    %2252 = vmatprep.mubr.f32.mxu0 %v2030
    %2253 = vmatmul.mubr.f32.gmra.mrb[0].mxu0 %v1751
    %v2254 = vpop.f32.mrb[0].mxu0
    %v2255 = vadd.f32 %v1913, %v2254
    %v2256 = vpop.f32.mrb[0].mxu0
    %v2257 = vadd.f32 %v1913, %v2256
    %2258 = vmatprep.mubr.f32.mxu0 %v2033
    %2259 = vmatmul.mubr.f32.gmra.mrb[0].mxu0 %v1753
    %v2260 = vpop.f32.mrb[0].mxu0
    %v2261 = vadd.f32 %v1918, %v2260
    %v2262 = vpop.f32.mrb[0].mxu0
    %v2263 = vadd.f32 %v1918, %v2262
    %2264 = vmatprep.mubr.f32.mxu0 %v2036
    %2265 = vmatmul.mubr.f32.gmra.mrb[0].mxu0 %v1755
    %v2266 = vpop.f32.mrb[0].mxu0
    %v2267 = vadd.f32 %v1923, %v2266
    %v2268 = vpop.f32.mrb[0].mxu0
    %v2269 = vadd.f32 %v1923, %v2268
    %2270 = vmatprep.mubr.f32.mxu0 %v2039
    %2271 = vmatmul.mubr.f32.gmra.mrb[0].mxu0 %v1757
    %v2272 = vpop.f32.mrb[0].mxu0
    %v2273 = vadd.f32 %v1928, %v2272
    %v2274 = vpop.f32.mrb[0].mxu0
    %v2275 = vadd.f32 %v1928, %v2274
    %2276 = vmatprep.mubr.f32.mxu0 %v2042
    %2277 = vmatmul.mubr.f32.gmra.mrb[0].mxu0 %v1759
    %v2278 = vpop.f32.mrb[0].mxu0
    %v2279 = vadd.f32 %v1933, %v2278
    %v2280 = vpop.f32.mrb[0].mxu0
    %v2281 = vadd.f32 %v1933, %v2280
    %2282 = vmatprep.mubr.f32.mxu0 %v2045
    %2283 = vmatmul.mubr.f32.gmra.mrb[0].mxu0 %v1761
    %v2284 = vpop.f32.mrb[0].mxu0
    %v2285 = vadd.f32 %v1938, %v2284
    %v2286 = vpop.f32.mrb[0].mxu0
    %v2287 = vadd.f32 %v1938, %v2286
    %2288 = vmatprep.mubr.f32.mxu0 %v2048
    %2289 = vmatmul.mubr.f32.gmra.mrb[0].mxu0 %v1763
    %v2290 = vpop.f32.mrb[0].mxu0
    %v2291 = vadd.f32 %v1943, %v2290
    %v2292 = vpop.f32.mrb[0].mxu0
    %v2293 = vadd.f32 %v1943, %v2292
    %2294 = vmatprep.mubr.f32.mxu0 %v2051
    %2295 = vmatmul.mubr.f32.gmra.mrb[0].mxu0 %v1765
    %v2296 = vpop.f32.mrb[0].mxu0
    %v2297 = vadd.f32 %v1948, %v2296
    %v2298 = vpop.f32.mrb[0].mxu0
    %v2299 = vadd.f32 %v1948, %v2298
    %2300 = vmatprep.mubr.f32.mxu0 %v2054
    %2301 = vmatmul.mubr.f32.gmra.mrb[0].mxu0 %v1767
    %v2302 = vpop.f32.mrb[0].mxu0
    %v2303 = vadd.f32 %v1953, %v2302
    %v2304 = vpop.f32.mrb[0].mxu0
    %v2305 = vadd.f32 %v1953, %v2304
    %2306 = vmatprep.mubr.f32.mxu0 %v2057
    %2307 = vmatmul.mubr.f32.gmra.mrb[0].mxu0 %v1769
    %v2308 = vpop.f32.mrb[0].mxu0
    %v2309 = vadd.f32 %v1958, %v2308
    %v2310 = vpop.f32.mrb[0].mxu0
    %v2311 = vadd.f32 %v1958, %v2310
    %2312 = vmatprep.mubr.f32.mxu0 %v2060
    %2313 = vmatmul.mubr.f32.gmra.mrb[0].mxu0 %v1771
    %v2314 = vpop.f32.mrb[0].mxu0
    %v2315 = vadd.f32 %v1963, %v2314
    %v2316 = vpop.f32.mrb[0].mxu0
    %v2317 = vadd.f32 %v1963, %v2316
    %2318 = vdwg.mxu0
    %v2319 = vmax.f32 %v2129, 0.0
    %v2320 = vmax.f32 %v2131, 0.0
    %v2321 = vmax.f32 %v2135, 0.0
    %v2322 = vmax.f32 %v2137, 0.0
    %v2323 = vmax.f32 %v2141, 0.0
    %v2324 = vmax.f32 %v2143, 0.0
    %v2325 = vmax.f32 %v2147, 0.0
    %v2326 = vmax.f32 %v2149, 0.0
    %v2327 = vmax.f32 %v2153, 0.0
    %v2328 = vmax.f32 %v2155, 0.0
    %v2329 = vmax.f32 %v2159, 0.0
    %v2330 = vmax.f32 %v2161, 0.0
    %v2331 = vmax.f32 %v2165, 0.0
    %v2332 = vmax.f32 %v2167, 0.0
    %v2333 = vmax.f32 %v2171, 0.0
    %v2334 = vmax.f32 %v2173, 0.0
    %v2335 = vmax.f32 %v2177, 0.0
    %v2336 = vmax.f32 %v2179, 0.0
    %v2337 = vmax.f32 %v2183, 0.0
    %v2338 = vmax.f32 %v2185, 0.0
    %v2339 = vmax.f32 %v2189, 0.0
    %v2340 = vmax.f32 %v2191, 0.0
    %v2341 = vmax.f32 %v2195, 0.0
    %v2342 = vmax.f32 %v2197, 0.0
    %v2343 = vmax.f32 %v2201, 0.0
    %v2344 = vmax.f32 %v2203, 0.0
    %v2345 = vmax.f32 %v2207, 0.0
    %v2346 = vmax.f32 %v2209, 0.0
    %v2347 = vmax.f32 %v2213, 0.0
    %v2348 = vmax.f32 %v2215, 0.0
    %v2349 = vmax.f32 %v2219, 0.0
    %v2350 = vmax.f32 %v2221, 0.0
    %v2351 = vmax.f32 %v2225, 0.0
    %v2352 = vmax.f32 %v2227, 0.0
    %v2353 = vmax.f32 %v2231, 0.0
    %v2354 = vmax.f32 %v2233, 0.0
    %v2355 = vmax.f32 %v2237, 0.0
    %v2356 = vmax.f32 %v2239, 0.0
    %v2357 = vmax.f32 %v2243, 0.0
    %v2358 = vmax.f32 %v2245, 0.0
    %v2359 = vmax.f32 %v2249, 0.0
    %v2360 = vmax.f32 %v2251, 0.0
    %v2361 = vmax.f32 %v2255, 0.0
    %v2362 = vmax.f32 %v2257, 0.0
    %v2363 = vmax.f32 %v2261, 0.0
    %v2364 = vmax.f32 %v2263, 0.0
    %v2365 = vmax.f32 %v2267, 0.0
    %v2366 = vmax.f32 %v2269, 0.0
    %v2367 = vmax.f32 %v2273, 0.0
    %v2368 = vmax.f32 %v2275, 0.0
    %v2369 = vmax.f32 %v2279, 0.0
    %v2370 = vmax.f32 %v2281, 0.0
    %v2371 = vmax.f32 %v2285, 0.0
    %v2372 = vmax.f32 %v2287, 0.0
    %v2373 = vmax.f32 %v2291, 0.0
    %v2374 = vmax.f32 %v2293, 0.0
    %v2375 = vmax.f32 %v2297, 0.0
    %v2376 = vmax.f32 %v2299, 0.0
    %v2377 = vmax.f32 %v2303, 0.0
    %v2378 = vmax.f32 %v2305, 0.0
    %v2379 = vmax.f32 %v2309, 0.0
    %v2380 = vmax.f32 %v2311, 0.0
    %v2381 = vmax.f32 %v2315, 0.0
    %v2382 = vmax.f32 %v2317, 0.0
    %v2383 = vmax.f32 %v2319, %v2351
    %v2384 = vmax.f32 %v2320, %v2352
    %v2385 = vmax.f32 %v2321, %v2353
    %v2386 = vmax.f32 %v2322, %v2354
    %v2387 = vmax.f32 %v2323, %v2355
    %v2388 = vmax.f32 %v2324, %v2356
    %v2389 = vmax.f32 %v2325, %v2357
    %v2390 = vmax.f32 %v2326, %v2358
    %v2391 = vmax.f32 %v2327, %v2359
    %v2392 = vmax.f32 %v2328, %v2360
    %v2393 = vmax.f32 %v2329, %v2361
    %v2394 = vmax.f32 %v2330, %v2362
    %v2395 = vmax.f32 %v2331, %v2363
    %v2396 = vmax.f32 %v2332, %v2364
    %v2397 = vmax.f32 %v2333, %v2365
    %v2398 = vmax.f32 %v2334, %v2366
    %v2399 = vmax.f32 %v2335, %v2367
    %v2400 = vmax.f32 %v2336, %v2368
    %v2401 = vmax.f32 %v2337, %v2369
    %v2402 = vmax.f32 %v2338, %v2370
    %v2403 = vmax.f32 %v2339, %v2371
    %v2404 = vmax.f32 %v2340, %v2372
    %v2405 = vmax.f32 %v2341, %v2373
    %v2406 = vmax.f32 %v2342, %v2374
    %v2407 = vmax.f32 %v2343, %v2375
    %v2408 = vmax.f32 %v2344, %v2376
    %v2409 = vmax.f32 %v2345, %v2377
    %v2410 = vmax.f32 %v2346, %v2378
    %v2411 = vmax.f32 %v2347, %v2379
    %v2412 = vmax.f32 %v2348, %v2380
    %v2413 = vmax.f32 %v2349, %v2381
    %v2414 = vmax.f32 %v2350, %v2382
    %v2415 = vld [vmem:[%s7] sm:$0x1]
    %s2416 = sld [smem:[#allocation2]]
    %v2417 = vstv %s2416
    %2418 = vmatprep.subr.mxu0 %v2384
    %2419 = vmatpush1.msra.mxu0 %v2383
    %2420 = vmatprep.subr.mxu0 %v2386
    %2421 = vmatpush1.msra.mxu0 %v2385
    %2422 = vmatprep.subr.mxu0 %v2388
    %2423 = vmatpush1.msra.mxu0 %v2387
    %2424 = vmatprep.subr.mxu0 %v2390
    %2425 = vmatpush1.msra.mxu0 %v2389
    %2426 = vmatprep.subr.mxu0 %v2392
    %2427 = vmatpush1.msra.mxu0 %v2391
    %2428 = vmatprep.subr.mxu0 %v2394
    %2429 = vmatpush1.msra.mxu0 %v2393
    %2430 = vmatprep.subr.mxu0 %v2396
    %2431 = vmatpush1.msra.mxu0 %v2395
    %2432 = vmatprep.subr.mxu0 %v2398
    %2433 = vmatpush1.msra.mxu0 %v2397
    %2434 = vmatprep.subr.mxu0 %v2400
    %2435 = vmatpush1.msra.mxu0 %v2399
    %2436 = vmatprep.subr.mxu0 %v2402
    %2437 = vmatpush1.msra.mxu0 %v2401
    %2438 = vmatprep.subr.mxu0 %v2404
    %2439 = vmatpush1.msra.mxu0 %v2403
    %2440 = vmatprep.subr.mxu0 %v2406
    %2441 = vmatpush1.msra.mxu0 %v2405
    %2442 = vmatprep.subr.mxu0 %v2408
    %2443 = vmatpush1.msra.mxu0 %v2407
    %2444 = vmatprep.subr.mxu0 %v2410
    %2445 = vmatpush1.msra.mxu0 %v2409
    %2446 = vmatprep.subr.mxu0 %v2412
    %2447 = vmatpush1.msra.mxu0 %v2411
    %2448 = vmatprep.subr.mxu0 %v2414
    %2449 = vmatpush1.msra.mxu0 %v2413
    %2450 = vmatprep.subr.mxu0 0.0
    %2451 = vmatpush1.msra.mxu0 0.0
    %2452 = vmatprep.subr.mxu0 0.0
    %2453 = vmatpush1.msra.mxu0 0.0
    %2454 = vmatprep.subr.mxu0 0.0
    %2455 = vmatpush1.msra.mxu0 0.0
    %2456 = vmatprep.subr.mxu0 0.0
    %2457 = vmatpush1.msra.mxu0 0.0
    %2458 = vmatprep.subr.mxu0 0.0
    %2459 = vmatpush1.msra.mxu0 0.0
    %2460 = vmatprep.subr.mxu0 0.0
    %2461 = vmatpush1.msra.mxu0 0.0
    %2462 = vmatprep.subr.mxu0 0.0
    %2463 = vmatpush1.msra.mxu0 0.0
    %2464 = vmatprep.subr.mxu0 0.0
    %2465 = vmatpush1.msra.mxu0 0.0
    %2466 = vmatprep.subr.mxu0 0.0
    %2467 = vmatpush1.msra.mxu0 0.0
    %2468 = vmatprep.subr.mxu0 0.0
    %2469 = vmatpush1.msra.mxu0 0.0
    %2470 = vmatprep.subr.mxu0 0.0
    %2471 = vmatpush1.msra.mxu0 0.0
    %2472 = vmatprep.subr.mxu0 0.0
    %2473 = vmatpush1.msra.mxu0 0.0
    %2474 = vmatprep.subr.mxu0 0.0
    %2475 = vmatpush1.msra.mxu0 0.0
    %2476 = vmatprep.subr.mxu0 0.0
    %2477 = vmatpush1.msra.mxu0 0.0
    %2478 = vmatprep.subr.mxu0 0.0
    %2479 = vmatpush1.msra.mxu0 0.0
    %2480 = vmatprep.subr.mxu0 0.0
    %2481 = vmatpush1.msra.mxu0 0.0
    %2482 = vmatprep.mubr.f32.mxu0 0.0
    %2483 = vmatmul.mubr.f32.gmra.mrb[0].mxu0 %v2415
    %v2484 = vpop.f32.mrb[0].mxu0
    %v2485 = vadd.f32 %v2417, %v2484
    %v2486 = vpop.f32.mrb[0].mxu0
    %v2487 = vadd.f32 %v2417, %v2486
    %2488 = vdwg.mxu0
    %v2491 = vcombine.low %v2485, %v2487
    %v2493 = vunpack.c.l.s4 1966171168
    %v2494 = vunpack.c.0.s8 %v2493
    %v2495 = vlaneseq
    %v2496 = vshrl.u32 %v2495, 7
    %v2497 = vsub.s32 %v2494, %v2496
    %v2498 = vrot.slane %v2491, %v2497
    %v2500 = vunpack.c.l.s4 1966171168
    %v2501 = vunpack.c.0.s8 %v2500
    %v2502 = vlaneseq
    %v2503 = vshrl.u32 %v2502, 7
    %v2504 = vsub.s32 %v2501, %v2503
    %v2505 = vrot.slane %v2498, %v2504
    %v2507 = vlaneseq
    %vm2508 = vcmp.ge.s32.totalorder %v2507, 0
    %vm2509 = vcmp.lt.s32.totalorder %v2507, 256
    %vm2510 = vmand %vm2508, %vm2509
    %2511 = vst.msk [vmem:[#allocation3] sm:$0x3] %vm2510, %v2505
    // Predicated region
    $region38: #{tpu_custom_call.1} parent=1 // pred_check
      _
    $region39: #{tpu_custom_call.1} parent=1 // pred_check_branch
      %2513 = sbr.rel (0) target = $region41
    $region40: #{tpu_custom_call.1} parent=1 // pred_region
      %s2515 = ssub.s32 32, 32
      %2516 = vsyncadd [#allocation4], %s2515
      %s2518 = sshll.u32 [#allocation3], 4
      %s2519 = int_to_ptr.vmem [resolvable:$true] %s2518
      %2521 = dma.vmem_to_hbm [thread:$0]  %s2519, 32, %s9, [#allocation4]
    $region41: #{tpu_custom_call.1} parent=1 // pred_fallthru
      _
    // Predicated region
    $region42: #{tpu_custom_call.1} parent=1 // pred_check
      _
    $region43: #{tpu_custom_call.1} parent=1 // pred_check_branch
      %2523 = sbr.rel (0) target = $region45
    $region44: #{tpu_custom_call.1} parent=1 // pred_region
      %2524 = dma.done [#allocation4], 32
    $region45: #{tpu_custom_call.1} parent=1 // pred_fallthru
      _
    %2525 = vsyncpa [#allocation4], 1

</llo_original>
